<compile_context>
chip_gen: v7x
topology: tpu7x:2x2x1
jax: 0.10.0
libtpu: 0.0.40
codegen_flags: <defaults>
</compile_context>

<pallas_src>
import jax
import jax.numpy as jnp
from jax.experimental import pallas as pl
from jax.experimental.pallas import tpu as pltpu

# ---------------- model hyper-parameters (small, consistent with the module) --
NUM_WORDS = 50
NUM_CHARS = 30
WORD_DIM = 16
CHAR_DIM = 8
HID_CH = 4 * CHAR_DIM        # CharCNN hidden channels
HIDDEN = 16                  # LSTM hidden size per direction
OUT_FEATURES = 32            # fc output size
NUM_LABELS = 5
K = NUM_LABELS + 1           # ChainCRF adds one pad label
B, L, CL = 2, 8, 8           # batch, sentence length, char length

_VMEM = pl.BlockSpec(memory_space=pltpu.MemorySpace.VMEM)
_DN3 = (((2,), (0,)), ((), ()))        # contract last dim of 3-D lhs with dim 0 of rhs


# ---------------- parameter blob layout (rows 8-aligned, 128 lanes) ------------
def _ceil8(n):
    return (n + 7) // 8 * 8


_SEGMENTS = (
    ("ctc1",  (NUM_CHARS, 3 * HID_CH)),     # char_embed @ conv1 (tap-concat)  -- gather folded
    ("c1b",   (1, HID_CH)),
    ("c2w",   (HID_CH, 3 * CHAR_DIM)),      # conv2 (tap-concat)
    ("c2b",   (1, CHAR_DIM)),
    ("wtwih", (NUM_WORDS, 8 * HIDDEN)),     # word_embed @ W_ih[word rows] (gate-permuted) -- gather folded
    ("wihc",  (CHAR_DIM, 8 * HIDDEN)),      # W_ih[char-feature rows]       (gate-permuted)
    ("whh",   (2 * HIDDEN, 8 * HIDDEN)),    # direction-block-sparse W_hh   (gate-permuted)
    ("bls",   (1, 8 * HIDDEN)),             # b_ih + b_hh (= 0 per reset_parameters)
    ("fcw",   (2 * HIDDEN, OUT_FEATURES)),
    ("fcb",   (1, OUT_FEATURES)),
    ("swf",   (OUT_FEATURES, K * K)),       # state_w tiled K times (CRF trans folded into bias)
    ("sbf",   (1, K * K)),                  # state_b tiled + trans flattened
)
_SEG_SHAPES = dict(_SEGMENTS)
_OFFSETS = {}
_row = 0
for _name, _shape in _SEGMENTS:
    _OFFSETS[_name] = _row
    _row = _ceil8(_row + _shape[0])
BLOB_ROWS = _row                 # 264
BLOB_LANES = 128
assert max(s[1] for s in _SEG_SHAPES.values()) <= BLOB_LANES


# ------------------------------- helpers (used inside the kernel) -------------
def _elu(x):
    # exact ELU; clamp the dead branch so exp never sees large positives.
    return jnp.where(x > 0, x, jnp.exp(jnp.minimum(x, 0.0)) - 1.0)


def _conv3_taps(z, c_out, bias):
    # Conv1d(kernel=3, padding=1) from tap-concatenated per-tap projections:
    #   out[t] = z_tap0[t-1] + z_tap1[t] + z_tap2[t+1] + bias   (t = axis 0)
    # Char position is the UNTILED leading axis, so the +/-1 shifts are plain
    # leading-axis concats (vreg regrouping only, no sublane/lane shuffles).
    z0 = z[..., :c_out]
    z1 = z[..., c_out:2 * c_out]
    z2 = z[..., 2 * c_out:3 * c_out]
    pad = jnp.zeros_like(z0[:1])
    left = jnp.concatenate([pad, z0[:-1]], axis=0)     # z_tap0[t-1]
    right = jnp.concatenate([z2[1:], pad], axis=0)     # z_tap2[t+1]
    return left + z1 + right + bias


# ------------------------------- fused forward kernel -------------------------
def fused_forward_kernel(word_ids_ref, char_ids_ref, blob_ref, out_ref):
    f32 = jnp.float32
    bsz, slen, _ = out_ref.shape
    nbl, clen = char_ids_ref.shape            # rows are time-major: row = t*B + b
    H = HIDDEN

    def seg(name):
        r0 = _OFFSETS[name]
        rows, cols = _SEG_SHAPES[name]
        return blob_ref[r0:r0 + rows, :cols]  # static slice: free view + load

    # ---- CharCNN (char-embedding gather folded into conv1) -------------------
    vocab_iota = jax.lax.broadcasted_iota(jnp.int32, (nbl, NUM_CHARS), 1)
    c_oh = jnp.concatenate(
        [(char_ids_ref[:, i:i + 1] == vocab_iota).astype(f32) for i in range(clen)],
        axis=0)                                                    # [CL*L*B, 30], row = cl*nbl + n
    z = jnp.dot(c_oh, seg("ctc1"), preferred_element_type=f32)     # [CL*L*B, 3*HID_CH]
    z = z.reshape(clen, nbl, 3 * HID_CH)                           # [CL, L*B, 3*HID_CH]
    h1 = _elu(_conv3_taps(z, HID_CH, seg("c1b")))                  # [CL, L*B, HID_CH]
    z = jax.lax.dot_general(h1, seg("c2w"), _DN3, preferred_element_type=f32)
    y = _elu(_conv3_taps(z, CHAR_DIM, seg("c2b")))                 # [CL, L*B, Dc]
    char_feat = jnp.max(y, axis=0)                                 # [L*B, Dc] (pools padded chars, as reference)

    # ---- LSTM input projection (word-embedding gather folded into W_ih) ------
    # dropout_in / dropout_rnn_in / dropout_out are identity in eval mode.
    w_oh = (word_ids_ref[...] ==
            jax.lax.broadcasted_iota(jnp.int32, (nbl, NUM_WORDS), 1)).astype(f32)
    xg = (jnp.dot(w_oh, seg("wtwih"), preferred_element_type=f32)
          + jnp.dot(char_feat, seg("wihc"), preferred_element_type=f32)
          + seg("bls"))                                            # [L*B, 8H], permuted gate layout

    # Per-step gate inputs assembled OUTSIDE the recurrence:
    # fwd-direction columns take time t, bwd-direction columns take time L-1-t.
    col = jax.lax.broadcasted_iota(jnp.int32, (1, 8 * H), 1)
    fwd_cols = (col % (2 * H)) < H
    xg_steps = [jnp.where(fwd_cols,
                          xg[t * bsz:(t + 1) * bsz],
                          xg[(slen - 1 - t) * bsz:(slen - t) * bsz])
                for t in range(slen)]

    # ---- fused BiLSTM: one [B,2H]x[2H,8H] matmul + 1 sigmoid + 2 tanh per step
    # gate layout: [i_f|i_b | f_f|f_b | o_f|o_b | g_f|g_b], h/c layout: [fwd|bwd]
    whh = seg("whh")                                               # [2H, 8H]
    h = jnp.zeros((bsz, 2 * H), f32)
    c = jnp.zeros((bsz, 2 * H), f32)
    hs = []
    for t in range(slen):                                          # static unroll, L small & fixed
        g = xg_steps[t] + jnp.dot(h, whh, preferred_element_type=f32)   # [B, 8H]
        sg = jax.nn.sigmoid(g[:, :6 * H])          # i|f|o gates, both dirs (96 lanes)
        gg = jnp.tanh(g[:, 6 * H:])                # g gate, both dirs (32 lanes)
        c = sg[:, 2 * H:4 * H] * c + sg[:, :2 * H] * gg
        h = sg[:, 4 * H:6 * H] * jnp.tanh(c)
        hs.append(h)

    # output at time t: fwd half from step t, bwd half from step L-1-t
    lane = jax.lax.broadcasted_iota(jnp.int32, (1, 2 * H), 1)
    rnn = jnp.stack([jnp.where(lane < H, hs[t], hs[slen - 1 - t])
                     for t in range(slen)], axis=1)                # [B, L, 2H]

    # ---- fc -> ELU -> readout with the CRF transition folded into the bias ---
    hfc = _elu(jax.lax.dot_general(rnn, seg("fcw"), _DN3, preferred_element_type=f32)
               + seg("fcb"))                                       # [B, L, F]
    out_ref[...] = (jax.lax.dot_general(hfc, seg("swf"), _DN3, preferred_element_type=f32)
                    + seg("sbf"))                                  # energy[b,t,p*K+c] = s[b,t,c] + trans[p,c]


# ------------------------------- parameters -----------------------------------
def init_params(key):
    keys = iter(jax.random.split(key, 16))

    def u(shape, lo=-0.1, hi=0.1):
        return jax.random.uniform(next(keys), shape, jnp.float32, lo, hi)

    params = {}
    params["word_embed"] = u((NUM_WORDS, WORD_DIM)).at[1].set(0.0)   # padding_idx=1
    params["char_embed"] = u((NUM_CHARS, CHAR_DIM)).at[1].set(0.0)   # padding_idx=1
    # CharCNN: Conv1d(Dc,4Dc,3,pad=1) -> ELU -> Conv1d(4Dc,Dc,3,pad=1) -> ELU; weights [tap, Cin, Cout]
    params["conv1_w"] = u((3, CHAR_DIM, HID_CH))
    params["conv1_b"] = u((1, HID_CH))
    params["conv2_w"] = u((3, HID_CH, CHAR_DIM))
    params["conv2_b"] = u((1, CHAR_DIM))
    # BiLSTM (single layer): direction-stacked weights, PyTorch gate order (i, f, g, o)
    d_in = WORD_DIM + CHAR_DIM
    params["w_ih"] = u((2, d_in, 4 * HIDDEN))
    params["w_hh"] = u((2, HIDDEN, 4 * HIDDEN))
    params["bias"] = jnp.zeros((2, 1, 4 * HIDDEN), jnp.float32)   # b_ih + b_hh = 0 per reset_parameters
    # fc + ChainCRF
    params["fc_w"] = u((2 * HIDDEN, OUT_FEATURES))
    params["fc_b"] = jnp.zeros((1, OUT_FEATURES), jnp.float32)
    params["state_w"] = u((OUT_FEATURES, K))
    params["state_b"] = jnp.zeros((1, K), jnp.float32)
    params["trans"] = jax.random.normal(next(keys), (K, K), jnp.float32)
    return params


def pack_params(params):
    """One-time wrapper-side repacking of all weights into a single VMEM blob."""
    H = HIDDEN

    def split_gates(w):                      # [..., 4H] PyTorch gate order (i, f, g, o)
        return (w[..., 0:H], w[..., H:2 * H], w[..., 2 * H:3 * H], w[..., 3 * H:4 * H])

    def pack_dirs(wf, wb):                   # -> [..., 8H] kernel layout [i|i, f|f, o|o, g|g]
        i0, f0, g0, o0 = split_gates(wf)
        i1, f1, g1, o1 = split_gates(wb)
        return jnp.concatenate([i0, i1, f0, f1, o0, o1, g0, g1], axis=-1)

    def tap_cat(w):                          # [3, Cin, Cout] -> [Cin, 3*Cout], tap-major lanes
        return jnp.transpose(w, (1, 0, 2)).reshape(w.shape[1], 3 * w.shape[2])

    conv1_cat = tap_cat(params["conv1_w"])
    conv2_cat = tap_cat(params["conv2_w"])
    wih_cat = pack_dirs(params["w_ih"][0], params["w_ih"][1])       # [Dw+Dc, 8H]
    zeros_hh = jnp.zeros_like(params["w_hh"][0])

    segs = {
        "ctc1":  params["char_embed"] @ conv1_cat,                  # char gather folded into conv1
        "c1b":   params["conv1_b"],
        "c2w":   conv2_cat,
        "c2b":   params["conv2_b"],
        "wtwih": params["word_embed"] @ wih_cat[:WORD_DIM],         # word gather folded into W_ih
        "wihc":  wih_cat[WORD_DIM:],
        "whh":   jnp.concatenate([pack_dirs(params["w_hh"][0], zeros_hh),
                                  pack_dirs(zeros_hh, params["w_hh"][1])], axis=0),
        "bls":   pack_dirs(params["bias"][0], params["bias"][1]),
        "fcw":   params["fc_w"],
        "fcb":   params["fc_b"],
        "swf":   jnp.tile(params["state_w"], (1, K)),               # CRF trans folded into readout
        "sbf":   jnp.tile(params["state_b"], (1, K)) + params["trans"].reshape(1, K * K),
    }
    blob = jnp.zeros((BLOB_ROWS, BLOB_LANES), jnp.float32)
    for name, shape in _SEGMENTS:
        a = segs[name]
        assert a.shape == shape, (name, a.shape, shape)
        r0 = _OFFSETS[name]
        blob = blob.at[r0:r0 + shape[0], :shape[1]].set(a)
    return blob


# ------------------------------- forward --------------------------------------
def birecurrentconvcrf_forward(param_blob, input_word, input_char):
    b, l = input_word.shape
    cl = input_char.shape[-1]
    # time-major row layout (row = t*B + b) shared by the word / char / LSTM paths.
    word_ids = jnp.transpose(input_word, (1, 0)).reshape(l * b, 1).astype(jnp.int32)
    char_ids = jnp.transpose(input_char, (1, 0, 2)).reshape(l * b, cl).astype(jnp.int32)

    energy_flat = pl.pallas_call(
        fused_forward_kernel,
        out_shape=jax.ShapeDtypeStruct((b, l, K * K), jnp.float32),
        in_specs=[_VMEM, _VMEM, _VMEM],
        out_specs=_VMEM,
    )(word_ids, char_ids, param_blob)
    # lane-dense [B, L, K*K] -> [B, L, K+1, K+1] is a metadata-only reshape.
    return energy_flat.reshape(b, l, K, K)
    # TODO(synk): mask!=None path (pack_padded_sequence + energy*mask), num_layers>1
    #             stacking, and a ("parallel",) grid over sentence blocks for
    #             production batch sizes (v7x 2nd TensorCore / v6e MXU utilization)
    #             are not exercised at this toy size.


# ------------------------------- main ------------------------------------------
if __name__ == "__main__":
    key = jax.random.PRNGKey(0)
    pkey, wkey, ckey = jax.random.split(key, 3)
    params = init_params(pkey)
    param_blob = pack_params(params)          # one-time weight repacking (3 kernel inputs total)
    input_word = jax.random.randint(wkey, (B, L), 0, NUM_WORDS, dtype=jnp.int32)
    input_char = jax.random.randint(ckey, (B, L, CL), 0, NUM_CHARS, dtype=jnp.int32)

    energy = birecurrentconvcrf_forward(param_blob, input_word, input_char)
    energy = jax.block_until_ready(energy)

    assert energy.shape == (B, L, K, K), energy.shape
    assert energy.dtype == jnp.float32
    assert bool(jnp.all(jnp.isfinite(energy)))
    print("KERNEL_OK")
</pallas_src>

<mosaic_0001>
module attributes {stable_mosaic.version = 11 : i64} {
  func.func @fused_forward_kernel(%arg0: memref<16x1xi32, #tpu.memory_space<vmem>>, %arg1: memref<16x8xi32, #tpu.memory_space<vmem>>, %arg2: memref<264x128xf32, #tpu.memory_space<vmem>>, %arg3: memref<2x8x36xf32, #tpu.memory_space<vmem>>) attributes {dimension_semantics = [], scalar_prefetch = 0 : i64, scratch_operands = 0 : i64, tpu.core_type = #tpu.core_type<tc>} {
    %0 = tpu.iota {dimensions = array<i32: 1>} : vector<16x30xi32>
    %c0 = arith.constant 0 : index
    %c0_0 = arith.constant 0 : index
    %1 = vector.load %arg1[%c0, %c0_0] : memref<16x8xi32, #tpu.memory_space<vmem>>, vector<16x1xi32>
    %2 = vector.broadcast %1 : vector<16x1xi32> to vector<16x30xi32>
    %3 = arith.cmpi eq, %2, %0 : vector<16x30xi32>
    %4 = arith.extui %3 : vector<16x30xi1> to vector<16x30xi32>
    %5 = arith.sitofp %4 : vector<16x30xi32> to vector<16x30xf32>
    %c0_1 = arith.constant 0 : index
    %c1 = arith.constant 1 : index
    %6 = vector.load %arg1[%c0_1, %c1] : memref<16x8xi32, #tpu.memory_space<vmem>>, vector<16x1xi32>
    %7 = vector.broadcast %6 : vector<16x1xi32> to vector<16x30xi32>
    %8 = arith.cmpi eq, %7, %0 : vector<16x30xi32>
    %9 = arith.extui %8 : vector<16x30xi1> to vector<16x30xi32>
    %10 = arith.sitofp %9 : vector<16x30xi32> to vector<16x30xf32>
    %c0_2 = arith.constant 0 : index
    %c2 = arith.constant 2 : index
    %11 = vector.load %arg1[%c0_2, %c2] : memref<16x8xi32, #tpu.memory_space<vmem>>, vector<16x1xi32>
    %12 = vector.broadcast %11 : vector<16x1xi32> to vector<16x30xi32>
    %13 = arith.cmpi eq, %12, %0 : vector<16x30xi32>
    %14 = arith.extui %13 : vector<16x30xi1> to vector<16x30xi32>
    %15 = arith.sitofp %14 : vector<16x30xi32> to vector<16x30xf32>
    %c0_3 = arith.constant 0 : index
    %c3 = arith.constant 3 : index
    %16 = vector.load %arg1[%c0_3, %c3] : memref<16x8xi32, #tpu.memory_space<vmem>>, vector<16x1xi32>
    %17 = vector.broadcast %16 : vector<16x1xi32> to vector<16x30xi32>
    %18 = arith.cmpi eq, %17, %0 : vector<16x30xi32>
    %19 = arith.extui %18 : vector<16x30xi1> to vector<16x30xi32>
    %20 = arith.sitofp %19 : vector<16x30xi32> to vector<16x30xf32>
    %c0_4 = arith.constant 0 : index
    %c4 = arith.constant 4 : index
    %21 = vector.load %arg1[%c0_4, %c4] : memref<16x8xi32, #tpu.memory_space<vmem>>, vector<16x1xi32>
    %22 = vector.broadcast %21 : vector<16x1xi32> to vector<16x30xi32>
    %23 = arith.cmpi eq, %22, %0 : vector<16x30xi32>
    %24 = arith.extui %23 : vector<16x30xi1> to vector<16x30xi32>
    %25 = arith.sitofp %24 : vector<16x30xi32> to vector<16x30xf32>
    %c0_5 = arith.constant 0 : index
    %c5 = arith.constant 5 : index
    %26 = vector.load %arg1[%c0_5, %c5] : memref<16x8xi32, #tpu.memory_space<vmem>>, vector<16x1xi32>
    %27 = vector.broadcast %26 : vector<16x1xi32> to vector<16x30xi32>
    %28 = arith.cmpi eq, %27, %0 : vector<16x30xi32>
    %29 = arith.extui %28 : vector<16x30xi1> to vector<16x30xi32>
    %30 = arith.sitofp %29 : vector<16x30xi32> to vector<16x30xf32>
    %c0_6 = arith.constant 0 : index
    %c6 = arith.constant 6 : index
    %31 = vector.load %arg1[%c0_6, %c6] : memref<16x8xi32, #tpu.memory_space<vmem>>, vector<16x1xi32>
    %32 = vector.broadcast %31 : vector<16x1xi32> to vector<16x30xi32>
    %33 = arith.cmpi eq, %32, %0 : vector<16x30xi32>
    %34 = arith.extui %33 : vector<16x30xi1> to vector<16x30xi32>
    %35 = arith.sitofp %34 : vector<16x30xi32> to vector<16x30xf32>
    %c0_7 = arith.constant 0 : index
    %c7 = arith.constant 7 : index
    %36 = vector.load %arg1[%c0_7, %c7] : memref<16x8xi32, #tpu.memory_space<vmem>>, vector<16x1xi32>
    %37 = vector.broadcast %36 : vector<16x1xi32> to vector<16x30xi32>
    %38 = arith.cmpi eq, %37, %0 : vector<16x30xi32>
    %39 = arith.extui %38 : vector<16x30xi1> to vector<16x30xi32>
    %40 = arith.sitofp %39 : vector<16x30xi32> to vector<16x30xf32>
    %41 = tpu.concatenate %5, %10, %15, %20, %25, %30, %35, %40 in 0 : vector<16x30xf32>, vector<16x30xf32>, vector<16x30xf32>, vector<16x30xf32>, vector<16x30xf32>, vector<16x30xf32>, vector<16x30xf32>, vector<16x30xf32> -> vector<128x30xf32>
    %c0_8 = arith.constant 0 : index
    %c0_9 = arith.constant 0 : index
    %42 = vector.load %arg2[%c0_8, %c0_9] : memref<264x128xf32, #tpu.memory_space<vmem>>, vector<30x96xf32>
    %cst = arith.constant dense<0.000000e+00> : vector<128x96xf32>
    %43 = tpu.matmul %41, %42, %cst {dimension_numbers = #tpu.dot_dimension_numbers<[1], [0], [0], [1], [0, 0, 1, 1], [], []>} : vector<128x30xf32>, vector<30x96xf32>, vector<128x96xf32> -> vector<128x96xf32>
    %44 = vector.shape_cast %43 : vector<128x96xf32> to vector<8x16x96xf32>
    %c32 = arith.constant 32 : index
    %c0_10 = arith.constant 0 : index
    %45 = vector.load %arg2[%c32, %c0_10] : memref<264x128xf32, #tpu.memory_space<vmem>>, vector<1x32xf32>
    %46 = vector.extract_strided_slice %44 {offsets = [0, 0, 0], sizes = [8, 16, 32], strides = [1, 1, 1]} : vector<8x16x96xf32> to vector<8x16x32xf32>
    %47 = vector.extract_strided_slice %44 {offsets = [0, 0, 32], sizes = [8, 16, 32], strides = [1, 1, 1]} : vector<8x16x96xf32> to vector<8x16x32xf32>
    %48 = vector.extract_strided_slice %44 {offsets = [0, 0, 64], sizes = [8, 16, 32], strides = [1, 1, 1]} : vector<8x16x96xf32> to vector<8x16x32xf32>
    %cst_11 = arith.constant 0.000000e+00 : f32
    %49 = vector.broadcast %cst_11 : f32 to vector<1x16x32xf32>
    %50 = vector.extract_strided_slice %46 {offsets = [0, 0, 0], sizes = [7, 16, 32], strides = [1, 1, 1]} : vector<8x16x32xf32> to vector<7x16x32xf32>
    %51 = tpu.concatenate %49, %50 in 0 : vector<1x16x32xf32>, vector<7x16x32xf32> -> vector<8x16x32xf32>
    %52 = vector.extract_strided_slice %48 {offsets = [1, 0, 0], sizes = [7, 16, 32], strides = [1, 1, 1]} : vector<8x16x32xf32> to vector<7x16x32xf32>
    %53 = tpu.concatenate %52, %49 in 0 : vector<7x16x32xf32>, vector<1x16x32xf32> -> vector<8x16x32xf32>
    %54 = arith.addf %51, %47 : vector<8x16x32xf32>
    %55 = arith.addf %54, %53 : vector<8x16x32xf32>
    %56 = vector.shape_cast %45 : vector<1x32xf32> to vector<1x1x32xf32>
    %57 = vector.broadcast %56 : vector<1x1x32xf32> to vector<8x16x32xf32>
    %58 = arith.addf %55, %57 : vector<8x16x32xf32>
    %cst_12 = arith.constant 0.000000e+00 : f32
    %59 = vector.broadcast %cst_12 : f32 to vector<8x16x32xf32>
    %60 = arith.cmpf ogt, %58, %59 : vector<8x16x32xf32>
    %cst_13 = arith.constant 0.000000e+00 : f32
    %61 = vector.broadcast %cst_13 : f32 to vector<8x16x32xf32>
    %62 = arith.minimumf %58, %61 : vector<8x16x32xf32>
    %63 = math.exp %62 : vector<8x16x32xf32>
    %cst_14 = arith.constant 1.000000e+00 : f32
    %64 = vector.broadcast %cst_14 : f32 to vector<8x16x32xf32>
    %65 = arith.subf %63, %64 : vector<8x16x32xf32>
    %66 = arith.select %60, %58, %65 : vector<8x16x32xi1>, vector<8x16x32xf32>
    %c40 = arith.constant 40 : index
    %c0_15 = arith.constant 0 : index
    %67 = vector.load %arg2[%c40, %c0_15] : memref<264x128xf32, #tpu.memory_space<vmem>>, vector<32x24xf32>
    %cst_16 = arith.constant dense<0.000000e+00> : vector<8x16x24xf32>
    %68 = tpu.matmul %66, %67, %cst_16 {dimension_numbers = #tpu.dot_dimension_numbers<[2], [0], [0, 1], [1], [0, 0, 0, 1, 1, 1], [], []>} : vector<8x16x32xf32>, vector<32x24xf32>, vector<8x16x24xf32> -> vector<8x16x24xf32>
    %c72 = arith.constant 72 : index
    %c0_17 = arith.constant 0 : index
    %69 = vector.load %arg2[%c72, %c0_17] : memref<264x128xf32, #tpu.memory_space<vmem>>, vector<1x8xf32>
    %70 = vector.extract_strided_slice %68 {offsets = [0, 0, 0], sizes = [8, 16, 8], strides = [1, 1, 1]} : vector<8x16x24xf32> to vector<8x16x8xf32>
    %71 = vector.extract_strided_slice %68 {offsets = [0, 0, 8], sizes = [8, 16, 8], strides = [1, 1, 1]} : vector<8x16x24xf32> to vector<8x16x8xf32>
    %72 = vector.extract_strided_slice %68 {offsets = [0, 0, 16], sizes = [8, 16, 8], strides = [1, 1, 1]} : vector<8x16x24xf32> to vector<8x16x8xf32>
    %cst_18 = arith.constant 0.000000e+00 : f32
    %73 = vector.broadcast %cst_18 : f32 to vector<1x16x8xf32>
    %74 = vector.extract_strided_slice %70 {offsets = [0, 0, 0], sizes = [7, 16, 8], strides = [1, 1, 1]} : vector<8x16x8xf32> to vector<7x16x8xf32>
    %75 = tpu.concatenate %73, %74 in 0 : vector<1x16x8xf32>, vector<7x16x8xf32> -> vector<8x16x8xf32>
    %76 = vector.extract_strided_slice %72 {offsets = [1, 0, 0], sizes = [7, 16, 8], strides = [1, 1, 1]} : vector<8x16x8xf32> to vector<7x16x8xf32>
    %77 = tpu.concatenate %76, %73 in 0 : vector<7x16x8xf32>, vector<1x16x8xf32> -> vector<8x16x8xf32>
    %78 = arith.addf %75, %71 : vector<8x16x8xf32>
    %79 = arith.addf %78, %77 : vector<8x16x8xf32>
    %80 = vector.shape_cast %69 : vector<1x8xf32> to vector<1x1x8xf32>
    %81 = vector.broadcast %80 : vector<1x1x8xf32> to vector<8x16x8xf32>
    %82 = arith.addf %79, %81 : vector<8x16x8xf32>
    %cst_19 = arith.constant 0.000000e+00 : f32
    %83 = vector.broadcast %cst_19 : f32 to vector<8x16x8xf32>
    %84 = arith.cmpf ogt, %82, %83 : vector<8x16x8xf32>
    %cst_20 = arith.constant 0.000000e+00 : f32
    %85 = vector.broadcast %cst_20 : f32 to vector<8x16x8xf32>
    %86 = arith.minimumf %82, %85 : vector<8x16x8xf32>
    %87 = math.exp %86 : vector<8x16x8xf32>
    %cst_21 = arith.constant 1.000000e+00 : f32
    %88 = vector.broadcast %cst_21 : f32 to vector<8x16x8xf32>
    %89 = arith.subf %87, %88 : vector<8x16x8xf32>
    %90 = arith.select %84, %82, %89 : vector<8x16x8xi1>, vector<8x16x8xf32>
    %cst_22 = arith.constant dense<0xFF800000> : vector<16x8xf32>
    %91 = vector.multi_reduction <maximumf>, %90, %cst_22 [0] : vector<8x16x8xf32> to vector<16x8xf32>
    %c0_23 = arith.constant 0 : index
    %c0_24 = arith.constant 0 : index
    %92 = vector.load %arg0[%c0_23, %c0_24] : memref<16x1xi32, #tpu.memory_space<vmem>>, vector<16x1xi32>
    %93 = tpu.iota {dimensions = array<i32: 1>} : vector<16x50xi32>
    %94 = vector.broadcast %92 : vector<16x1xi32> to vector<16x50xi32>
    %95 = arith.cmpi eq, %94, %93 : vector<16x50xi32>
    %96 = arith.extui %95 : vector<16x50xi1> to vector<16x50xi32>
    %97 = arith.sitofp %96 : vector<16x50xi32> to vector<16x50xf32>
    %c80 = arith.constant 80 : index
    %c0_25 = arith.constant 0 : index
    %98 = vector.load %arg2[%c80, %c0_25] : memref<264x128xf32, #tpu.memory_space<vmem>>, vector<50x128xf32>
    %cst_26 = arith.constant dense<0.000000e+00> : vector<16x128xf32>
    %99 = tpu.matmul %97, %98, %cst_26 {dimension_numbers = #tpu.dot_dimension_numbers<[1], [0], [0], [1], [0, 0, 1, 1], [], []>} : vector<16x50xf32>, vector<50x128xf32>, vector<16x128xf32> -> vector<16x128xf32>
    %c136 = arith.constant 136 : index
    %c0_27 = arith.constant 0 : index
    %100 = vector.load %arg2[%c136, %c0_27] : memref<264x128xf32, #tpu.memory_space<vmem>>, vector<8x128xf32>
    %cst_28 = arith.constant dense<0.000000e+00> : vector<16x128xf32>
    %101 = tpu.matmul %91, %100, %cst_28 {dimension_numbers = #tpu.dot_dimension_numbers<[1], [0], [0], [1], [0, 0, 1, 1], [], []>} : vector<16x8xf32>, vector<8x128xf32>, vector<16x128xf32> -> vector<16x128xf32>
    %102 = arith.addf %99, %101 : vector<16x128xf32>
    %c176 = arith.constant 176 : index
    %c0_29 = arith.constant 0 : index
    %103 = vector.load %arg2[%c176, %c0_29] : memref<264x128xf32, #tpu.memory_space<vmem>>, vector<1x128xf32>
    %104 = vector.broadcast %103 : vector<1x128xf32> to vector<16x128xf32>
    %105 = arith.addf %102, %104 : vector<16x128xf32>
    %106 = tpu.iota {dimensions = array<i32: 1>} : vector<1x128xi32>
    %c32_i32 = arith.constant 32 : i32
    %c0_i32 = arith.constant 0 : i32
    %107 = arith.cmpi eq, %c32_i32, %c0_i32 : i32
    %c1_i32 = arith.constant 1 : i32
    %108 = arith.select %107, %c1_i32, %c32_i32 : i32
    %109 = vector.broadcast %108 : i32 to vector<1x128xi32>
    %110 = arith.remsi %106, %109 : vector<1x128xi32>
    %c0_i32_30 = arith.constant 0 : i32
    %111 = vector.broadcast %c0_i32_30 : i32 to vector<1x128xi32>
    %112 = arith.cmpi ne, %110, %111 : vector<1x128xi32>
    %c0_i32_31 = arith.constant 0 : i32
    %113 = vector.broadcast %c0_i32_31 : i32 to vector<1x128xi32>
    %114 = arith.cmpi slt, %110, %113 : vector<1x128xi32>
    %c0_i32_32 = arith.constant 0 : i32
    %115 = arith.cmpi slt, %108, %c0_i32_32 : i32
    %116 = vector.broadcast %115 : i1 to vector<1x128xi1>
    %117 = vector.broadcast %116 : vector<1x128xi1> to vector<1x128xi1>
    %118 = arith.xori %114, %117 : vector<1x128xi1>
    %119 = arith.andi %118, %112 : vector<1x128xi1>
    %120 = vector.broadcast %108 : i32 to vector<1x128xi32>
    %121 = arith.addi %110, %120 : vector<1x128xi32>
    %122 = arith.select %119, %121, %110 : vector<1x128xi1>, vector<1x128xi32>
    %c16_i32 = arith.constant 16 : i32
    %123 = vector.broadcast %c16_i32 : i32 to vector<1x128xi32>
    %124 = arith.cmpi slt, %122, %123 : vector<1x128xi32>
    %125 = vector.extract_strided_slice %105 {offsets = [0, 0], sizes = [2, 128], strides = [1, 1]} : vector<16x128xf32> to vector<2x128xf32>
    %126 = vector.extract_strided_slice %105 {offsets = [14, 0], sizes = [2, 128], strides = [1, 1]} : vector<16x128xf32> to vector<2x128xf32>
    %127 = vector.shape_cast %124 : vector<1x128xi1> to vector<1x128xi1>
    %128 = vector.broadcast %127 : vector<1x128xi1> to vector<2x128xi1>
    %129 = arith.select %128, %125, %126 : vector<2x128xi1>, vector<2x128xf32>
    %130 = vector.extract_strided_slice %105 {offsets = [2, 0], sizes = [2, 128], strides = [1, 1]} : vector<16x128xf32> to vector<2x128xf32>
    %131 = vector.extract_strided_slice %105 {offsets = [12, 0], sizes = [2, 128], strides = [1, 1]} : vector<16x128xf32> to vector<2x128xf32>
    %132 = vector.shape_cast %124 : vector<1x128xi1> to vector<1x128xi1>
    %133 = vector.broadcast %132 : vector<1x128xi1> to vector<2x128xi1>
    %134 = arith.select %133, %130, %131 : vector<2x128xi1>, vector<2x128xf32>
    %135 = vector.extract_strided_slice %105 {offsets = [4, 0], sizes = [2, 128], strides = [1, 1]} : vector<16x128xf32> to vector<2x128xf32>
    %136 = vector.extract_strided_slice %105 {offsets = [10, 0], sizes = [2, 128], strides = [1, 1]} : vector<16x128xf32> to vector<2x128xf32>
    %137 = vector.shape_cast %124 : vector<1x128xi1> to vector<1x128xi1>
    %138 = vector.broadcast %137 : vector<1x128xi1> to vector<2x128xi1>
    %139 = arith.select %138, %135, %136 : vector<2x128xi1>, vector<2x128xf32>
    %140 = vector.extract_strided_slice %105 {offsets = [6, 0], sizes = [2, 128], strides = [1, 1]} : vector<16x128xf32> to vector<2x128xf32>
    %141 = vector.extract_strided_slice %105 {offsets = [8, 0], sizes = [2, 128], strides = [1, 1]} : vector<16x128xf32> to vector<2x128xf32>
    %142 = vector.shape_cast %124 : vector<1x128xi1> to vector<1x128xi1>
    %143 = vector.broadcast %142 : vector<1x128xi1> to vector<2x128xi1>
    %144 = arith.select %143, %140, %141 : vector<2x128xi1>, vector<2x128xf32>
    %145 = vector.extract_strided_slice %105 {offsets = [8, 0], sizes = [2, 128], strides = [1, 1]} : vector<16x128xf32> to vector<2x128xf32>
    %146 = vector.extract_strided_slice %105 {offsets = [6, 0], sizes = [2, 128], strides = [1, 1]} : vector<16x128xf32> to vector<2x128xf32>
    %147 = vector.shape_cast %124 : vector<1x128xi1> to vector<1x128xi1>
    %148 = vector.broadcast %147 : vector<1x128xi1> to vector<2x128xi1>
    %149 = arith.select %148, %145, %146 : vector<2x128xi1>, vector<2x128xf32>
    %150 = vector.extract_strided_slice %105 {offsets = [10, 0], sizes = [2, 128], strides = [1, 1]} : vector<16x128xf32> to vector<2x128xf32>
    %151 = vector.extract_strided_slice %105 {offsets = [4, 0], sizes = [2, 128], strides = [1, 1]} : vector<16x128xf32> to vector<2x128xf32>
    %152 = vector.shape_cast %124 : vector<1x128xi1> to vector<1x128xi1>
    %153 = vector.broadcast %152 : vector<1x128xi1> to vector<2x128xi1>
    %154 = arith.select %153, %150, %151 : vector<2x128xi1>, vector<2x128xf32>
    %155 = vector.extract_strided_slice %105 {offsets = [12, 0], sizes = [2, 128], strides = [1, 1]} : vector<16x128xf32> to vector<2x128xf32>
    %156 = vector.extract_strided_slice %105 {offsets = [2, 0], sizes = [2, 128], strides = [1, 1]} : vector<16x128xf32> to vector<2x128xf32>
    %157 = vector.shape_cast %124 : vector<1x128xi1> to vector<1x128xi1>
    %158 = vector.broadcast %157 : vector<1x128xi1> to vector<2x128xi1>
    %159 = arith.select %158, %155, %156 : vector<2x128xi1>, vector<2x128xf32>
    %160 = vector.extract_strided_slice %105 {offsets = [14, 0], sizes = [2, 128], strides = [1, 1]} : vector<16x128xf32> to vector<2x128xf32>
    %161 = vector.extract_strided_slice %105 {offsets = [0, 0], sizes = [2, 128], strides = [1, 1]} : vector<16x128xf32> to vector<2x128xf32>
    %162 = vector.shape_cast %124 : vector<1x128xi1> to vector<1x128xi1>
    %163 = vector.broadcast %162 : vector<1x128xi1> to vector<2x128xi1>
    %164 = arith.select %163, %160, %161 : vector<2x128xi1>, vector<2x128xf32>
    %c144 = arith.constant 144 : index
    %c0_33 = arith.constant 0 : index
    %165 = vector.load %arg2[%c144, %c0_33] : memref<264x128xf32, #tpu.memory_space<vmem>>, vector<32x128xf32>
    %cst_34 = arith.constant 0.000000e+00 : f32
    %166 = vector.broadcast %cst_34 : f32 to vector<2x32xf32>
    %cst_35 = arith.constant 0.000000e+00 : f32
    %167 = vector.broadcast %cst_35 : f32 to vector<2x32xf32>
    %cst_36 = arith.constant dense<0.000000e+00> : vector<2x128xf32>
    %168 = tpu.matmul %166, %165, %cst_36 {dimension_numbers = #tpu.dot_dimension_numbers<[1], [0], [0], [1], [0, 0, 1, 1], [], []>} : vector<2x32xf32>, vector<32x128xf32>, vector<2x128xf32> -> vector<2x128xf32>
    %169 = arith.addf %129, %168 : vector<2x128xf32>
    %170 = vector.extract_strided_slice %169 {offsets = [0, 0], sizes = [2, 96], strides = [1, 1]} : vector<2x128xf32> to vector<2x96xf32>
    %171 = arith.negf %170 : vector<2x96xf32>
    %172 = math.exp %171 : vector<2x96xf32>
    %cst_37 = arith.constant 1.000000e+00 : f32
    %173 = vector.broadcast %cst_37 : f32 to vector<2x96xf32>
    %174 = arith.addf %173, %172 : vector<2x96xf32>
    %175 = arith.divf %173, %174 : vector<2x96xf32>
    %176 = vector.extract_strided_slice %169 {offsets = [0, 96], sizes = [2, 32], strides = [1, 1]} : vector<2x128xf32> to vector<2x32xf32>
    %177 = math.tanh %176 : vector<2x32xf32>
    %178 = vector.extract_strided_slice %175 {offsets = [0, 32], sizes = [2, 32], strides = [1, 1]} : vector<2x96xf32> to vector<2x32xf32>
    %179 = arith.mulf %178, %167 : vector<2x32xf32>
    %180 = vector.extract_strided_slice %175 {offsets = [0, 0], sizes = [2, 32], strides = [1, 1]} : vector<2x96xf32> to vector<2x32xf32>
    %181 = arith.mulf %180, %177 : vector<2x32xf32>
    %182 = arith.addf %179, %181 : vector<2x32xf32>
    %183 = vector.extract_strided_slice %175 {offsets = [0, 64], sizes = [2, 32], strides = [1, 1]} : vector<2x96xf32> to vector<2x32xf32>
    %184 = math.tanh %182 : vector<2x32xf32>
    %185 = arith.mulf %183, %184 : vector<2x32xf32>
    %cst_38 = arith.constant dense<0.000000e+00> : vector<2x128xf32>
    %186 = tpu.matmul %185, %165, %cst_38 {dimension_numbers = #tpu.dot_dimension_numbers<[1], [0], [0], [1], [0, 0, 1, 1], [], []>} : vector<2x32xf32>, vector<32x128xf32>, vector<2x128xf32> -> vector<2x128xf32>
    %187 = arith.addf %134, %186 : vector<2x128xf32>
    %188 = vector.extract_strided_slice %187 {offsets = [0, 0], sizes = [2, 96], strides = [1, 1]} : vector<2x128xf32> to vector<2x96xf32>
    %189 = arith.negf %188 : vector<2x96xf32>
    %190 = math.exp %189 : vector<2x96xf32>
    %cst_39 = arith.constant 1.000000e+00 : f32
    %191 = vector.broadcast %cst_39 : f32 to vector<2x96xf32>
    %192 = arith.addf %191, %190 : vector<2x96xf32>
    %193 = arith.divf %191, %192 : vector<2x96xf32>
    %194 = vector.extract_strided_slice %187 {offsets = [0, 96], sizes = [2, 32], strides = [1, 1]} : vector<2x128xf32> to vector<2x32xf32>
    %195 = math.tanh %194 : vector<2x32xf32>
    %196 = vector.extract_strided_slice %193 {offsets = [0, 32], sizes = [2, 32], strides = [1, 1]} : vector<2x96xf32> to vector<2x32xf32>
    %197 = arith.mulf %196, %182 : vector<2x32xf32>
    %198 = vector.extract_strided_slice %193 {offsets = [0, 0], sizes = [2, 32], strides = [1, 1]} : vector<2x96xf32> to vector<2x32xf32>
    %199 = arith.mulf %198, %195 : vector<2x32xf32>
    %200 = arith.addf %197, %199 : vector<2x32xf32>
    %201 = vector.extract_strided_slice %193 {offsets = [0, 64], sizes = [2, 32], strides = [1, 1]} : vector<2x96xf32> to vector<2x32xf32>
    %202 = math.tanh %200 : vector<2x32xf32>
    %203 = arith.mulf %201, %202 : vector<2x32xf32>
    %cst_40 = arith.constant dense<0.000000e+00> : vector<2x128xf32>
    %204 = tpu.matmul %203, %165, %cst_40 {dimension_numbers = #tpu.dot_dimension_numbers<[1], [0], [0], [1], [0, 0, 1, 1], [], []>} : vector<2x32xf32>, vector<32x128xf32>, vector<2x128xf32> -> vector<2x128xf32>
    %205 = arith.addf %139, %204 : vector<2x128xf32>
    %206 = vector.extract_strided_slice %205 {offsets = [0, 0], sizes = [2, 96], strides = [1, 1]} : vector<2x128xf32> to vector<2x96xf32>
    %207 = arith.negf %206 : vector<2x96xf32>
    %208 = math.exp %207 : vector<2x96xf32>
    %cst_41 = arith.constant 1.000000e+00 : f32
    %209 = vector.broadcast %cst_41 : f32 to vector<2x96xf32>
    %210 = arith.addf %209, %208 : vector<2x96xf32>
    %211 = arith.divf %209, %210 : vector<2x96xf32>
    %212 = vector.extract_strided_slice %205 {offsets = [0, 96], sizes = [2, 32], strides = [1, 1]} : vector<2x128xf32> to vector<2x32xf32>
    %213 = math.tanh %212 : vector<2x32xf32>
    %214 = vector.extract_strided_slice %211 {offsets = [0, 32], sizes = [2, 32], strides = [1, 1]} : vector<2x96xf32> to vector<2x32xf32>
    %215 = arith.mulf %214, %200 : vector<2x32xf32>
    %216 = vector.extract_strided_slice %211 {offsets = [0, 0], sizes = [2, 32], strides = [1, 1]} : vector<2x96xf32> to vector<2x32xf32>
    %217 = arith.mulf %216, %213 : vector<2x32xf32>
    %218 = arith.addf %215, %217 : vector<2x32xf32>
    %219 = vector.extract_strided_slice %211 {offsets = [0, 64], sizes = [2, 32], strides = [1, 1]} : vector<2x96xf32> to vector<2x32xf32>
    %220 = math.tanh %218 : vector<2x32xf32>
    %221 = arith.mulf %219, %220 : vector<2x32xf32>
    %cst_42 = arith.constant dense<0.000000e+00> : vector<2x128xf32>
    %222 = tpu.matmul %221, %165, %cst_42 {dimension_numbers = #tpu.dot_dimension_numbers<[1], [0], [0], [1], [0, 0, 1, 1], [], []>} : vector<2x32xf32>, vector<32x128xf32>, vector<2x128xf32> -> vector<2x128xf32>
    %223 = arith.addf %144, %222 : vector<2x128xf32>
    %224 = vector.extract_strided_slice %223 {offsets = [0, 0], sizes = [2, 96], strides = [1, 1]} : vector<2x128xf32> to vector<2x96xf32>
    %225 = arith.negf %224 : vector<2x96xf32>
    %226 = math.exp %225 : vector<2x96xf32>
    %cst_43 = arith.constant 1.000000e+00 : f32
    %227 = vector.broadcast %cst_43 : f32 to vector<2x96xf32>
    %228 = arith.addf %227, %226 : vector<2x96xf32>
    %229 = arith.divf %227, %228 : vector<2x96xf32>
    %230 = vector.extract_strided_slice %223 {offsets = [0, 96], sizes = [2, 32], strides = [1, 1]} : vector<2x128xf32> to vector<2x32xf32>
    %231 = math.tanh %230 : vector<2x32xf32>
    %232 = vector.extract_strided_slice %229 {offsets = [0, 32], sizes = [2, 32], strides = [1, 1]} : vector<2x96xf32> to vector<2x32xf32>
    %233 = arith.mulf %232, %218 : vector<2x32xf32>
    %234 = vector.extract_strided_slice %229 {offsets = [0, 0], sizes = [2, 32], strides = [1, 1]} : vector<2x96xf32> to vector<2x32xf32>
    %235 = arith.mulf %234, %231 : vector<2x32xf32>
    %236 = arith.addf %233, %235 : vector<2x32xf32>
    %237 = vector.extract_strided_slice %229 {offsets = [0, 64], sizes = [2, 32], strides = [1, 1]} : vector<2x96xf32> to vector<2x32xf32>
    %238 = math.tanh %236 : vector<2x32xf32>
    %239 = arith.mulf %237, %238 : vector<2x32xf32>
    %cst_44 = arith.constant dense<0.000000e+00> : vector<2x128xf32>
    %240 = tpu.matmul %239, %165, %cst_44 {dimension_numbers = #tpu.dot_dimension_numbers<[1], [0], [0], [1], [0, 0, 1, 1], [], []>} : vector<2x32xf32>, vector<32x128xf32>, vector<2x128xf32> -> vector<2x128xf32>
    %241 = arith.addf %149, %240 : vector<2x128xf32>
    %242 = vector.extract_strided_slice %241 {offsets = [0, 0], sizes = [2, 96], strides = [1, 1]} : vector<2x128xf32> to vector<2x96xf32>
    %243 = arith.negf %242 : vector<2x96xf32>
    %244 = math.exp %243 : vector<2x96xf32>
    %cst_45 = arith.constant 1.000000e+00 : f32
    %245 = vector.broadcast %cst_45 : f32 to vector<2x96xf32>
    %246 = arith.addf %245, %244 : vector<2x96xf32>
    %247 = arith.divf %245, %246 : vector<2x96xf32>
    %248 = vector.extract_strided_slice %241 {offsets = [0, 96], sizes = [2, 32], strides = [1, 1]} : vector<2x128xf32> to vector<2x32xf32>
    %249 = math.tanh %248 : vector<2x32xf32>
    %250 = vector.extract_strided_slice %247 {offsets = [0, 32], sizes = [2, 32], strides = [1, 1]} : vector<2x96xf32> to vector<2x32xf32>
    %251 = arith.mulf %250, %236 : vector<2x32xf32>
    %252 = vector.extract_strided_slice %247 {offsets = [0, 0], sizes = [2, 32], strides = [1, 1]} : vector<2x96xf32> to vector<2x32xf32>
    %253 = arith.mulf %252, %249 : vector<2x32xf32>
    %254 = arith.addf %251, %253 : vector<2x32xf32>
    %255 = vector.extract_strided_slice %247 {offsets = [0, 64], sizes = [2, 32], strides = [1, 1]} : vector<2x96xf32> to vector<2x32xf32>
    %256 = math.tanh %254 : vector<2x32xf32>
    %257 = arith.mulf %255, %256 : vector<2x32xf32>
    %cst_46 = arith.constant dense<0.000000e+00> : vector<2x128xf32>
    %258 = tpu.matmul %257, %165, %cst_46 {dimension_numbers = #tpu.dot_dimension_numbers<[1], [0], [0], [1], [0, 0, 1, 1], [], []>} : vector<2x32xf32>, vector<32x128xf32>, vector<2x128xf32> -> vector<2x128xf32>
    %259 = arith.addf %154, %258 : vector<2x128xf32>
    %260 = vector.extract_strided_slice %259 {offsets = [0, 0], sizes = [2, 96], strides = [1, 1]} : vector<2x128xf32> to vector<2x96xf32>
    %261 = arith.negf %260 : vector<2x96xf32>
    %262 = math.exp %261 : vector<2x96xf32>
    %cst_47 = arith.constant 1.000000e+00 : f32
    %263 = vector.broadcast %cst_47 : f32 to vector<2x96xf32>
    %264 = arith.addf %263, %262 : vector<2x96xf32>
    %265 = arith.divf %263, %264 : vector<2x96xf32>
    %266 = vector.extract_strided_slice %259 {offsets = [0, 96], sizes = [2, 32], strides = [1, 1]} : vector<2x128xf32> to vector<2x32xf32>
    %267 = math.tanh %266 : vector<2x32xf32>
    %268 = vector.extract_strided_slice %265 {offsets = [0, 32], sizes = [2, 32], strides = [1, 1]} : vector<2x96xf32> to vector<2x32xf32>
    %269 = arith.mulf %268, %254 : vector<2x32xf32>
    %270 = vector.extract_strided_slice %265 {offsets = [0, 0], sizes = [2, 32], strides = [1, 1]} : vector<2x96xf32> to vector<2x32xf32>
    %271 = arith.mulf %270, %267 : vector<2x32xf32>
    %272 = arith.addf %269, %271 : vector<2x32xf32>
    %273 = vector.extract_strided_slice %265 {offsets = [0, 64], sizes = [2, 32], strides = [1, 1]} : vector<2x96xf32> to vector<2x32xf32>
    %274 = math.tanh %272 : vector<2x32xf32>
    %275 = arith.mulf %273, %274 : vector<2x32xf32>
    %cst_48 = arith.constant dense<0.000000e+00> : vector<2x128xf32>
    %276 = tpu.matmul %275, %165, %cst_48 {dimension_numbers = #tpu.dot_dimension_numbers<[1], [0], [0], [1], [0, 0, 1, 1], [], []>} : vector<2x32xf32>, vector<32x128xf32>, vector<2x128xf32> -> vector<2x128xf32>
    %277 = arith.addf %159, %276 : vector<2x128xf32>
    %278 = vector.extract_strided_slice %277 {offsets = [0, 0], sizes = [2, 96], strides = [1, 1]} : vector<2x128xf32> to vector<2x96xf32>
    %279 = arith.negf %278 : vector<2x96xf32>
    %280 = math.exp %279 : vector<2x96xf32>
    %cst_49 = arith.constant 1.000000e+00 : f32
    %281 = vector.broadcast %cst_49 : f32 to vector<2x96xf32>
    %282 = arith.addf %281, %280 : vector<2x96xf32>
    %283 = arith.divf %281, %282 : vector<2x96xf32>
    %284 = vector.extract_strided_slice %277 {offsets = [0, 96], sizes = [2, 32], strides = [1, 1]} : vector<2x128xf32> to vector<2x32xf32>
    %285 = math.tanh %284 : vector<2x32xf32>
    %286 = vector.extract_strided_slice %283 {offsets = [0, 32], sizes = [2, 32], strides = [1, 1]} : vector<2x96xf32> to vector<2x32xf32>
    %287 = arith.mulf %286, %272 : vector<2x32xf32>
    %288 = vector.extract_strided_slice %283 {offsets = [0, 0], sizes = [2, 32], strides = [1, 1]} : vector<2x96xf32> to vector<2x32xf32>
    %289 = arith.mulf %288, %285 : vector<2x32xf32>
    %290 = arith.addf %287, %289 : vector<2x32xf32>
    %291 = vector.extract_strided_slice %283 {offsets = [0, 64], sizes = [2, 32], strides = [1, 1]} : vector<2x96xf32> to vector<2x32xf32>
    %292 = math.tanh %290 : vector<2x32xf32>
    %293 = arith.mulf %291, %292 : vector<2x32xf32>
    %cst_50 = arith.constant dense<0.000000e+00> : vector<2x128xf32>
    %294 = tpu.matmul %293, %165, %cst_50 {dimension_numbers = #tpu.dot_dimension_numbers<[1], [0], [0], [1], [0, 0, 1, 1], [], []>} : vector<2x32xf32>, vector<32x128xf32>, vector<2x128xf32> -> vector<2x128xf32>
    %295 = arith.addf %164, %294 : vector<2x128xf32>
    %296 = vector.extract_strided_slice %295 {offsets = [0, 0], sizes = [2, 96], strides = [1, 1]} : vector<2x128xf32> to vector<2x96xf32>
    %297 = arith.negf %296 : vector<2x96xf32>
    %298 = math.exp %297 : vector<2x96xf32>
    %cst_51 = arith.constant 1.000000e+00 : f32
    %299 = vector.broadcast %cst_51 : f32 to vector<2x96xf32>
    %300 = arith.addf %299, %298 : vector<2x96xf32>
    %301 = arith.divf %299, %300 : vector<2x96xf32>
    %302 = vector.extract_strided_slice %295 {offsets = [0, 96], sizes = [2, 32], strides = [1, 1]} : vector<2x128xf32> to vector<2x32xf32>
    %303 = math.tanh %302 : vector<2x32xf32>
    %304 = vector.extract_strided_slice %301 {offsets = [0, 32], sizes = [2, 32], strides = [1, 1]} : vector<2x96xf32> to vector<2x32xf32>
    %305 = arith.mulf %304, %290 : vector<2x32xf32>
    %306 = vector.extract_strided_slice %301 {offsets = [0, 0], sizes = [2, 32], strides = [1, 1]} : vector<2x96xf32> to vector<2x32xf32>
    %307 = arith.mulf %306, %303 : vector<2x32xf32>
    %308 = arith.addf %305, %307 : vector<2x32xf32>
    %309 = vector.extract_strided_slice %301 {offsets = [0, 64], sizes = [2, 32], strides = [1, 1]} : vector<2x96xf32> to vector<2x32xf32>
    %310 = math.tanh %308 : vector<2x32xf32>
    %311 = arith.mulf %309, %310 : vector<2x32xf32>
    %312 = tpu.iota {dimensions = array<i32: 1>} : vector<1x32xi32>
    %c16_i32_52 = arith.constant 16 : i32
    %313 = vector.broadcast %c16_i32_52 : i32 to vector<1x32xi32>
    %314 = arith.cmpi slt, %312, %313 : vector<1x32xi32>
    %315 = vector.shape_cast %314 : vector<1x32xi1> to vector<1x32xi1>
    %316 = vector.broadcast %315 : vector<1x32xi1> to vector<2x32xi1>
    %317 = arith.select %316, %185, %311 : vector<2x32xi1>, vector<2x32xf32>
    %c16_i32_53 = arith.constant 16 : i32
    %318 = vector.broadcast %c16_i32_53 : i32 to vector<1x32xi32>
    %319 = arith.cmpi slt, %312, %318 : vector<1x32xi32>
    %320 = vector.shape_cast %319 : vector<1x32xi1> to vector<1x32xi1>
    %321 = vector.broadcast %320 : vector<1x32xi1> to vector<2x32xi1>
    %322 = arith.select %321, %203, %293 : vector<2x32xi1>, vector<2x32xf32>
    %c16_i32_54 = arith.constant 16 : i32
    %323 = vector.broadcast %c16_i32_54 : i32 to vector<1x32xi32>
    %324 = arith.cmpi slt, %312, %323 : vector<1x32xi32>
    %325 = vector.shape_cast %324 : vector<1x32xi1> to vector<1x32xi1>
    %326 = vector.broadcast %325 : vector<1x32xi1> to vector<2x32xi1>
    %327 = arith.select %326, %221, %275 : vector<2x32xi1>, vector<2x32xf32>
    %c16_i32_55 = arith.constant 16 : i32
    %328 = vector.broadcast %c16_i32_55 : i32 to vector<1x32xi32>
    %329 = arith.cmpi slt, %312, %328 : vector<1x32xi32>
    %330 = vector.shape_cast %329 : vector<1x32xi1> to vector<1x32xi1>
    %331 = vector.broadcast %330 : vector<1x32xi1> to vector<2x32xi1>
    %332 = arith.select %331, %239, %257 : vector<2x32xi1>, vector<2x32xf32>
    %c16_i32_56 = arith.constant 16 : i32
    %333 = vector.broadcast %c16_i32_56 : i32 to vector<1x32xi32>
    %334 = arith.cmpi slt, %312, %333 : vector<1x32xi32>
    %335 = vector.shape_cast %334 : vector<1x32xi1> to vector<1x32xi1>
    %336 = vector.broadcast %335 : vector<1x32xi1> to vector<2x32xi1>
    %337 = arith.select %336, %257, %239 : vector<2x32xi1>, vector<2x32xf32>
    %c16_i32_57 = arith.constant 16 : i32
    %338 = vector.broadcast %c16_i32_57 : i32 to vector<1x32xi32>
    %339 = arith.cmpi slt, %312, %338 : vector<1x32xi32>
    %340 = vector.shape_cast %339 : vector<1x32xi1> to vector<1x32xi1>
    %341 = vector.broadcast %340 : vector<1x32xi1> to vector<2x32xi1>
    %342 = arith.select %341, %275, %221 : vector<2x32xi1>, vector<2x32xf32>
    %c16_i32_58 = arith.constant 16 : i32
    %343 = vector.broadcast %c16_i32_58 : i32 to vector<1x32xi32>
    %344 = arith.cmpi slt, %312, %343 : vector<1x32xi32>
    %345 = vector.shape_cast %344 : vector<1x32xi1> to vector<1x32xi1>
    %346 = vector.broadcast %345 : vector<1x32xi1> to vector<2x32xi1>
    %347 = arith.select %346, %293, %203 : vector<2x32xi1>, vector<2x32xf32>
    %c16_i32_59 = arith.constant 16 : i32
    %348 = vector.broadcast %c16_i32_59 : i32 to vector<1x32xi32>
    %349 = arith.cmpi slt, %312, %348 : vector<1x32xi32>
    %350 = vector.shape_cast %349 : vector<1x32xi1> to vector<1x32xi1>
    %351 = vector.broadcast %350 : vector<1x32xi1> to vector<2x32xi1>
    %352 = arith.select %351, %311, %185 : vector<2x32xi1>, vector<2x32xf32>
    %353 = vector.shape_cast %317 : vector<2x32xf32> to vector<2x1x32xf32>
    %354 = vector.shape_cast %322 : vector<2x32xf32> to vector<2x1x32xf32>
    %355 = vector.shape_cast %327 : vector<2x32xf32> to vector<2x1x32xf32>
    %356 = vector.shape_cast %332 : vector<2x32xf32> to vector<2x1x32xf32>
    %357 = vector.shape_cast %337 : vector<2x32xf32> to vector<2x1x32xf32>
    %358 = vector.shape_cast %342 : vector<2x32xf32> to vector<2x1x32xf32>
    %359 = vector.shape_cast %347 : vector<2x32xf32> to vector<2x1x32xf32>
    %360 = vector.shape_cast %352 : vector<2x32xf32> to vector<2x1x32xf32>
    %361 = tpu.concatenate %353, %354, %355, %356, %357, %358, %359, %360 in 1 : vector<2x1x32xf32>, vector<2x1x32xf32>, vector<2x1x32xf32>, vector<2x1x32xf32>, vector<2x1x32xf32>, vector<2x1x32xf32>, vector<2x1x32xf32>, vector<2x1x32xf32> -> vector<2x8x32xf32>
    %c184 = arith.constant 184 : index
    %c0_60 = arith.constant 0 : index
    %362 = vector.load %arg2[%c184, %c0_60] : memref<264x128xf32, #tpu.memory_space<vmem>>, vector<32x32xf32>
    %cst_61 = arith.constant dense<0.000000e+00> : vector<2x8x32xf32>
    %363 = tpu.matmul %361, %362, %cst_61 {dimension_numbers = #tpu.dot_dimension_numbers<[2], [0], [0, 1], [1], [0, 0, 0, 1, 1, 1], [], []>} : vector<2x8x32xf32>, vector<32x32xf32>, vector<2x8x32xf32> -> vector<2x8x32xf32>
    %c216 = arith.constant 216 : index
    %c0_62 = arith.constant 0 : index
    %364 = vector.load %arg2[%c216, %c0_62] : memref<264x128xf32, #tpu.memory_space<vmem>>, vector<1x32xf32>
    %365 = vector.shape_cast %364 : vector<1x32xf32> to vector<1x1x32xf32>
    %366 = vector.broadcast %365 : vector<1x1x32xf32> to vector<2x8x32xf32>
    %367 = arith.addf %363, %366 : vector<2x8x32xf32>
    %cst_63 = arith.constant 0.000000e+00 : f32
    %368 = vector.broadcast %cst_63 : f32 to vector<2x8x32xf32>
    %369 = arith.cmpf ogt, %367, %368 : vector<2x8x32xf32>
    %cst_64 = arith.constant 0.000000e+00 : f32
    %370 = vector.broadcast %cst_64 : f32 to vector<2x8x32xf32>
    %371 = arith.minimumf %367, %370 : vector<2x8x32xf32>
    %372 = math.exp %371 : vector<2x8x32xf32>
    %cst_65 = arith.constant 1.000000e+00 : f32
    %373 = vector.broadcast %cst_65 : f32 to vector<2x8x32xf32>
    %374 = arith.subf %372, %373 : vector<2x8x32xf32>
    %375 = arith.select %369, %367, %374 : vector<2x8x32xi1>, vector<2x8x32xf32>
    %c224 = arith.constant 224 : index
    %c0_66 = arith.constant 0 : index
    %376 = vector.load %arg2[%c224, %c0_66] : memref<264x128xf32, #tpu.memory_space<vmem>>, vector<32x36xf32>
    %cst_67 = arith.constant dense<0.000000e+00> : vector<2x8x36xf32>
    %377 = tpu.matmul %375, %376, %cst_67 {dimension_numbers = #tpu.dot_dimension_numbers<[2], [0], [0, 1], [1], [0, 0, 0, 1, 1, 1], [], []>} : vector<2x8x32xf32>, vector<32x36xf32>, vector<2x8x36xf32> -> vector<2x8x36xf32>
    %c256 = arith.constant 256 : index
    %c0_68 = arith.constant 0 : index
    %378 = vector.load %arg2[%c256, %c0_68] : memref<264x128xf32, #tpu.memory_space<vmem>>, vector<1x36xf32>
    %379 = vector.shape_cast %378 : vector<1x36xf32> to vector<1x1x36xf32>
    %380 = vector.broadcast %379 : vector<1x1x36xf32> to vector<2x8x36xf32>
    %381 = arith.addf %377, %380 : vector<2x8x36xf32>
    %c0_69 = arith.constant 0 : index
    %c0_70 = arith.constant 0 : index
    %c0_71 = arith.constant 0 : index
    %382 = vector.load %arg3[%c0_69, %c0_70, %c0_71] : memref<2x8x36xf32, #tpu.memory_space<vmem>>, vector<2x8x36xf32>
    tpu.vector_store %arg3[%c0_69, %c0_70, %c0_71], %381 {strides = array<i32>} : memref<2x8x36xf32, #tpu.memory_space<vmem>>, vector<2x8x36xf32>,
    return
  }
}

</mosaic_0001>

<llo_original>
// kernel: tpu_custom_call.1
$region0: #{tpu_custom_call.1}
  #allocation0 [shape = 'u32[]', space=smem, size = 0x4, offset = 0x4, fixed_abs, tag = 'smem constant byte address 0x4 - core index']
  #allocation1 [shape = 'u32[144,128]{1,0:T(1,128)}', space=vmem, size = 0x12000, scoped, tag = 'internal scratch']
  %s0 = inlined_call_operand.vmem [shape: s32[16,1], index: 0, kind: input, shape index: {}]
  %s1 = inlined_call_operand.vmem [shape: s32[16,8], index: 1, kind: input, shape index: {}]
  %s2 = inlined_call_operand.hbm [shape: f32[264,128], index: 2, kind: input, shape index: {}]
  %s3 = inlined_call_operand.hbm [shape: f32[2,8,36], index: 3, kind: output, shape index: {}]
  %s4 = sld [smem:[#allocation0]]
  $region26: #{tpu_custom_call.1} parent=0
    _
  %s6 = ssub.s32 1, %s4
  %s7 = scalar_select 0, %s6, %s4
  $region1: #{tpu_custom_call.1} parent=0
    #allocation2 [shape = 'u8[135168]{0}', space=vmem, size = 0x21000, scoped, tag = 'input window, operand 2, single buffered']
    #allocation3 [shape = 's32[1]{0}', space=sflag, size = 0x4, scoped, tag = 'scoped memory for tpu_custom_call.1']
    #allocation4 [shape = 's32[1]{0}', space=sflag, size = 0x4, scoped, tag = 'scoped memory for tpu_custom_call.1']
    #allocation5 [shape = 'u8[8192]{0}', space=vmem, size = 0x2000, scoped, tag = 'output window, operand 0, single buffered']
    %8 = vsyncpa [#allocation3], 0
    %9 = vsyncpa [#allocation4], 0
    // Predicated region
    $region2: #{tpu_custom_call.1} parent=1 // pred_check
      _
    $region3: #{tpu_custom_call.1} parent=1 // pred_check_branch
      %11 = sbr.rel (0) target = $region5
    $region4: #{tpu_custom_call.1} parent=1 // pred_region
      _
    $region5: #{tpu_custom_call.1} parent=1 // pred_fallthru
      _
    // Predicated region
    $region6: #{tpu_custom_call.1} parent=1 // pred_check
      _
    $region7: #{tpu_custom_call.1} parent=1 // pred_check_branch
      %13 = sbr.rel (0) target = $region9
    $region8: #{tpu_custom_call.1} parent=1 // pred_region
      _
    $region9: #{tpu_custom_call.1} parent=1 // pred_fallthru
      _
    // Predicated region
    $region10: #{tpu_custom_call.1} parent=1 // pred_check
      _
    $region11: #{tpu_custom_call.1} parent=1 // pred_check_branch
      %15 = sbr.rel (0) target = $region13
    $region12: #{tpu_custom_call.1} parent=1 // pred_region
      %s17 = ssub.s32 4224, 4224
      %18 = vsyncadd [#allocation3], %s17
      %s19 = sshll.u32 [#allocation2], 4
      %s20 = int_to_ptr.vmem [resolvable:$true] %s19
      %25 = dma.hbm_to_vmem [thread:$0]  %s2, 4224, %s20, [#allocation3], 128, 128, 8
    $region13: #{tpu_custom_call.1} parent=1 // pred_fallthru
      _
    // Predicated region
    $region14: #{tpu_custom_call.1} parent=1 // pred_check
      _
    $region15: #{tpu_custom_call.1} parent=1 // pred_check_branch
      %27 = sbr.rel (0) target = $region17
    $region16: #{tpu_custom_call.1} parent=1 // pred_region
      %28 = dma.done [#allocation3], 4224
    $region17: #{tpu_custom_call.1} parent=1 // pred_fallthru
      _
    %v29 = vlaneseq
    %v30 = vand.u32 %v29, 127
    %v31 = vld [vmem:[%s1] sm:$0xff]
    %v32 = vld [vmem:[%s1 + $0x8] sm:$0xff]
    %33 = vset.pattern.permute.xlu0 0
    %34 = vperm.xlu0 %33, %v31
    %v35 = vpop.permute.xlu0 %34
    %36 = vset.pattern.permute.xlu0 0
    %37 = vperm.xlu0 %36, %v32
    %v38 = vpop.permute.xlu0 %37
    %vm39 = vcmp.eq.s32.totalorder %v35, %v30
    %vm40 = vcmp.eq.s32.totalorder %v38, %v30
    %v41 = vsel %vm39, 1, 0
    %v42 = vsel %vm40, 1, 0
    %v43 = vcvt.s32.f32 %v41
    %v44 = vcvt.s32.f32 %v42
    %45 = vset.pattern.permute.xlu0 1
    %46 = vperm.xlu0 %45, %v31
    %v47 = vpop.permute.xlu0 %46
    %48 = vset.pattern.permute.xlu0 1
    %49 = vperm.xlu0 %48, %v32
    %v50 = vpop.permute.xlu0 %49
    %vm51 = vcmp.eq.s32.totalorder %v47, %v30
    %vm52 = vcmp.eq.s32.totalorder %v50, %v30
    %v53 = vsel %vm51, 1, 0
    %v54 = vsel %vm52, 1, 0
    %v55 = vcvt.s32.f32 %v53
    %v56 = vcvt.s32.f32 %v54
    %57 = vset.pattern.permute.xlu0 2
    %58 = vperm.xlu0 %57, %v31
    %v59 = vpop.permute.xlu0 %58
    %60 = vset.pattern.permute.xlu0 2
    %61 = vperm.xlu0 %60, %v32
    %v62 = vpop.permute.xlu0 %61
    %vm63 = vcmp.eq.s32.totalorder %v59, %v30
    %vm64 = vcmp.eq.s32.totalorder %v62, %v30
    %v65 = vsel %vm63, 1, 0
    %v66 = vsel %vm64, 1, 0
    %v67 = vcvt.s32.f32 %v65
    %v68 = vcvt.s32.f32 %v66
    %69 = vset.pattern.permute.xlu0 3
    %70 = vperm.xlu0 %69, %v31
    %v71 = vpop.permute.xlu0 %70
    %72 = vset.pattern.permute.xlu0 3
    %73 = vperm.xlu0 %72, %v32
    %v74 = vpop.permute.xlu0 %73
    %vm75 = vcmp.eq.s32.totalorder %v71, %v30
    %vm76 = vcmp.eq.s32.totalorder %v74, %v30
    %v77 = vsel %vm75, 1, 0
    %v78 = vsel %vm76, 1, 0
    %v79 = vcvt.s32.f32 %v77
    %v80 = vcvt.s32.f32 %v78
    %81 = vset.pattern.permute.xlu0 4
    %82 = vperm.xlu0 %81, %v31
    %v83 = vpop.permute.xlu0 %82
    %84 = vset.pattern.permute.xlu0 4
    %85 = vperm.xlu0 %84, %v32
    %v86 = vpop.permute.xlu0 %85
    %vm87 = vcmp.eq.s32.totalorder %v83, %v30
    %vm88 = vcmp.eq.s32.totalorder %v86, %v30
    %v89 = vsel %vm87, 1, 0
    %v90 = vsel %vm88, 1, 0
    %v91 = vcvt.s32.f32 %v89
    %v92 = vcvt.s32.f32 %v90
    %93 = vset.pattern.permute.xlu0 5
    %94 = vperm.xlu0 %93, %v31
    %v95 = vpop.permute.xlu0 %94
    %96 = vset.pattern.permute.xlu0 5
    %97 = vperm.xlu0 %96, %v32
    %v98 = vpop.permute.xlu0 %97
    %vm99 = vcmp.eq.s32.totalorder %v95, %v30
    %vm100 = vcmp.eq.s32.totalorder %v98, %v30
    %v101 = vsel %vm99, 1, 0
    %v102 = vsel %vm100, 1, 0
    %v103 = vcvt.s32.f32 %v101
    %v104 = vcvt.s32.f32 %v102
    %105 = vset.pattern.permute.xlu0 6
    %106 = vperm.xlu0 %105, %v31
    %v107 = vpop.permute.xlu0 %106
    %108 = vset.pattern.permute.xlu0 6
    %109 = vperm.xlu0 %108, %v32
    %v110 = vpop.permute.xlu0 %109
    %vm111 = vcmp.eq.s32.totalorder %v107, %v30
    %vm112 = vcmp.eq.s32.totalorder %v110, %v30
    %v113 = vsel %vm111, 1, 0
    %v114 = vsel %vm112, 1, 0
    %v115 = vcvt.s32.f32 %v113
    %v116 = vcvt.s32.f32 %v114
    %117 = vset.pattern.permute.xlu0 7
    %118 = vperm.xlu0 %117, %v31
    %v119 = vpop.permute.xlu0 %118
    %120 = vset.pattern.permute.xlu0 7
    %121 = vperm.xlu0 %120, %v32
    %v122 = vpop.permute.xlu0 %121
    %vm123 = vcmp.eq.s32.totalorder %v119, %v30
    %vm124 = vcmp.eq.s32.totalorder %v122, %v30
    %v125 = vsel %vm123, 1, 0
    %v126 = vsel %vm124, 1, 0
    %v127 = vcvt.s32.f32 %v125
    %v128 = vcvt.s32.f32 %v126
    %v129 = vld [vmem:[#allocation2] sm:$0xff]
    %v130 = vld [vmem:[#allocation2 + $0x8] sm:$0xff]
    %v131 = vld [vmem:[#allocation2 + $0x10] sm:$0xff]
    %v132 = vld [vmem:[#allocation2 + $0x18] sm:$0x3f]
    %vm133 = vcmask 244736
    %v135 = vsel %vm133, %v43, 0
    %v138 = vsel %vm133, %v44, 0
    %v141 = vsel %vm133, %v55, 0
    %v144 = vsel %vm133, %v56, 0
    %v147 = vsel %vm133, %v67, 0
    %v150 = vsel %vm133, %v68, 0
    %v153 = vsel %vm133, %v79, 0
    %v156 = vsel %vm133, %v80, 0
    %v159 = vsel %vm133, %v91, 0
    %v162 = vsel %vm133, %v92, 0
    %v165 = vsel %vm133, %v103, 0
    %v168 = vsel %vm133, %v104, 0
    %v171 = vsel %vm133, %v115, 0
    %v174 = vsel %vm133, %v116, 0
    %v177 = vsel %vm133, %v127, 0
    %v180 = vsel %vm133, %v128, 0
    %vm182 = vcmask 1045504
    %v184 = vsel %vm182, %v132, 0
    %186 = vmatprep.subr.mxu0 0.0
    %187 = vmatpush1.msra.mxu0 %v129
    %188 = vmatprep.subr.mxu0 0.0
    %189 = vmatpush1.msra.mxu0 %v130
    %190 = vmatprep.subr.mxu0 0.0
    %191 = vmatpush1.msra.mxu0 %v131
    %192 = vmatprep.subr.mxu0 0.0
    %193 = vmatpush1.msra.mxu0 %v184
    %194 = vmatprep.subr.mxu0 0.0
    %195 = vmatpush1.msra.mxu0 0.0
    %196 = vmatprep.subr.mxu0 0.0
    %197 = vmatpush1.msra.mxu0 0.0
    %198 = vmatprep.subr.mxu0 0.0
    %199 = vmatpush1.msra.mxu0 0.0
    %200 = vmatprep.subr.mxu0 0.0
    %201 = vmatpush1.msra.mxu0 0.0
    %202 = vmatprep.subr.mxu0 0.0
    %203 = vmatpush1.msra.mxu0 0.0
    %204 = vmatprep.subr.mxu0 0.0
    %205 = vmatpush1.msra.mxu0 0.0
    %206 = vmatprep.subr.mxu0 0.0
    %207 = vmatpush1.msra.mxu0 0.0
    %208 = vmatprep.subr.mxu0 0.0
    %209 = vmatpush1.msra.mxu0 0.0
    %210 = vmatprep.subr.mxu0 0.0
    %211 = vmatpush1.msra.mxu0 0.0
    %212 = vmatprep.subr.mxu0 0.0
    %213 = vmatpush1.msra.mxu0 0.0
    %214 = vmatprep.subr.mxu0 0.0
    %215 = vmatpush1.msra.mxu0 0.0
    %216 = vmatprep.subr.mxu0 0.0
    %217 = vmatpush1.msra.mxu0 0.0
    %218 = vmatprep.subr.mxu0 0.0
    %219 = vmatpush1.msra.mxu0 0.0
    %220 = vmatprep.subr.mxu0 0.0
    %221 = vmatpush1.msra.mxu0 0.0
    %222 = vmatprep.subr.mxu0 0.0
    %223 = vmatpush1.msra.mxu0 0.0
    %224 = vmatprep.subr.mxu0 0.0
    %225 = vmatpush1.msra.mxu0 0.0
    %226 = vmatprep.subr.mxu0 0.0
    %227 = vmatpush1.msra.mxu0 0.0
    %228 = vmatprep.subr.mxu0 0.0
    %229 = vmatpush1.msra.mxu0 0.0
    %230 = vmatprep.subr.mxu0 0.0
    %231 = vmatpush1.msra.mxu0 0.0
    %232 = vmatprep.subr.mxu0 0.0
    %233 = vmatpush1.msra.mxu0 0.0
    %234 = vmatprep.subr.mxu0 0.0
    %235 = vmatpush1.msra.mxu0 0.0
    %236 = vmatprep.subr.mxu0 0.0
    %237 = vmatpush1.msra.mxu0 0.0
    %238 = vmatprep.subr.mxu0 0.0
    %239 = vmatpush1.msra.mxu0 0.0
    %240 = vmatprep.subr.mxu0 0.0
    %241 = vmatpush1.msra.mxu0 0.0
    %242 = vmatprep.subr.mxu0 0.0
    %243 = vmatpush1.msra.mxu0 0.0
    %244 = vmatprep.subr.mxu0 0.0
    %245 = vmatpush1.msra.mxu0 0.0
    %246 = vmatprep.subr.mxu0 0.0
    %247 = vmatpush1.msra.mxu0 0.0
    %248 = vmatprep.subr.mxu0 0.0
    %249 = vmatpush1.msra.mxu0 0.0
    %250 = vmatprep.mubr.f32.mxu0 0.0
    %251 = vmatmul.mubr.f32.gmra.mrb[0].mxu0 %v135
    %v252 = vpop.f32.mrb[0].mxu0
    %v253 = vadd.f32 0.0, %v252
    %v254 = vpop.f32.mrb[0].mxu0
    %255 = vmatprep.mubr.f32.mxu0 0.0
    %256 = vmatmul.mubr.f32.gmra.mrb[0].mxu0 %v138
    %v257 = vpop.f32.mrb[0].mxu0
    %v258 = vadd.f32 0.0, %v257
    %v259 = vpop.f32.mrb[0].mxu0
    %260 = vmatprep.mubr.f32.mxu0 0.0
    %261 = vmatmul.mubr.f32.gmra.mrb[0].mxu0 %v141
    %v262 = vpop.f32.mrb[0].mxu0
    %v263 = vadd.f32 0.0, %v262
    %v264 = vpop.f32.mrb[0].mxu0
    %265 = vmatprep.mubr.f32.mxu0 0.0
    %266 = vmatmul.mubr.f32.gmra.mrb[0].mxu0 %v144
    %v267 = vpop.f32.mrb[0].mxu0
    %v268 = vadd.f32 0.0, %v267
    %v269 = vpop.f32.mrb[0].mxu0
    %270 = vmatprep.mubr.f32.mxu0 0.0
    %271 = vmatmul.mubr.f32.gmra.mrb[0].mxu0 %v147
    %v272 = vpop.f32.mrb[0].mxu0
    %v273 = vadd.f32 0.0, %v272
    %v274 = vpop.f32.mrb[0].mxu0
    %275 = vmatprep.mubr.f32.mxu0 0.0
    %276 = vmatmul.mubr.f32.gmra.mrb[0].mxu0 %v150
    %v277 = vpop.f32.mrb[0].mxu0
    %v278 = vadd.f32 0.0, %v277
    %v279 = vpop.f32.mrb[0].mxu0
    %280 = vmatprep.mubr.f32.mxu0 0.0
    %281 = vmatmul.mubr.f32.gmra.mrb[0].mxu0 %v153
    %v282 = vpop.f32.mrb[0].mxu0
    %v283 = vadd.f32 0.0, %v282
    %v284 = vpop.f32.mrb[0].mxu0
    %285 = vmatprep.mubr.f32.mxu0 0.0
    %286 = vmatmul.mubr.f32.gmra.mrb[0].mxu0 %v156
    %v287 = vpop.f32.mrb[0].mxu0
    %v288 = vadd.f32 0.0, %v287
    %v289 = vpop.f32.mrb[0].mxu0
    %290 = vmatprep.mubr.f32.mxu0 0.0
    %291 = vmatmul.mubr.f32.gmra.mrb[0].mxu0 %v159
    %v292 = vpop.f32.mrb[0].mxu0
    %v293 = vadd.f32 0.0, %v292
    %v294 = vpop.f32.mrb[0].mxu0
    %295 = vmatprep.mubr.f32.mxu0 0.0
    %296 = vmatmul.mubr.f32.gmra.mrb[0].mxu0 %v162
    %v297 = vpop.f32.mrb[0].mxu0
    %v298 = vadd.f32 0.0, %v297
    %v299 = vpop.f32.mrb[0].mxu0
    %300 = vmatprep.mubr.f32.mxu0 0.0
    %301 = vmatmul.mubr.f32.gmra.mrb[0].mxu0 %v165
    %v302 = vpop.f32.mrb[0].mxu0
    %v303 = vadd.f32 0.0, %v302
    %v304 = vpop.f32.mrb[0].mxu0
    %305 = vmatprep.mubr.f32.mxu0 0.0
    %306 = vmatmul.mubr.f32.gmra.mrb[0].mxu0 %v168
    %v307 = vpop.f32.mrb[0].mxu0
    %v308 = vadd.f32 0.0, %v307
    %v309 = vpop.f32.mrb[0].mxu0
    %310 = vmatprep.mubr.f32.mxu0 0.0
    %311 = vmatmul.mubr.f32.gmra.mrb[0].mxu0 %v171
    %v312 = vpop.f32.mrb[0].mxu0
    %v313 = vadd.f32 0.0, %v312
    %v314 = vpop.f32.mrb[0].mxu0
    %315 = vmatprep.mubr.f32.mxu0 0.0
    %316 = vmatmul.mubr.f32.gmra.mrb[0].mxu0 %v174
    %v317 = vpop.f32.mrb[0].mxu0
    %v318 = vadd.f32 0.0, %v317
    %v319 = vpop.f32.mrb[0].mxu0
    %320 = vmatprep.mubr.f32.mxu0 0.0
    %321 = vmatmul.mubr.f32.gmra.mrb[0].mxu0 %v177
    %v322 = vpop.f32.mrb[0].mxu0
    %v323 = vadd.f32 0.0, %v322
    %v324 = vpop.f32.mrb[0].mxu0
    %325 = vmatprep.mubr.f32.mxu0 0.0
    %326 = vmatmul.mubr.f32.gmra.mrb[0].mxu0 %v180
    %v327 = vpop.f32.mrb[0].mxu0
    %v328 = vadd.f32 0.0, %v327
    %v329 = vpop.f32.mrb[0].mxu0
    %330 = vdwg.mxu0
    %v331 = vld [vmem:[#allocation2 + $0x20] sm:$0x1]
    %348 = vrot.lane.b32.xlu0 %v253, 96
    %v349 = vpop.permute.xlu0 %348
    %350 = vrot.lane.b32.xlu0 %v258, 96
    %v351 = vpop.permute.xlu0 %350
    %352 = vrot.lane.b32.xlu0 %v263, 96
    %v353 = vpop.permute.xlu0 %352
    %354 = vrot.lane.b32.xlu0 %v268, 96
    %v355 = vpop.permute.xlu0 %354
    %356 = vrot.lane.b32.xlu0 %v273, 96
    %v357 = vpop.permute.xlu0 %356
    %358 = vrot.lane.b32.xlu0 %v278, 96
    %v359 = vpop.permute.xlu0 %358
    %360 = vrot.lane.b32.xlu0 %v283, 96
    %v361 = vpop.permute.xlu0 %360
    %362 = vrot.lane.b32.xlu0 %v288, 96
    %v363 = vpop.permute.xlu0 %362
    %364 = vrot.lane.b32.xlu0 %v293, 96
    %v365 = vpop.permute.xlu0 %364
    %366 = vrot.lane.b32.xlu0 %v298, 96
    %v367 = vpop.permute.xlu0 %366
    %368 = vrot.lane.b32.xlu0 %v303, 96
    %v369 = vpop.permute.xlu0 %368
    %370 = vrot.lane.b32.xlu0 %v308, 96
    %v371 = vpop.permute.xlu0 %370
    %372 = vrot.lane.b32.xlu0 %v313, 96
    %v373 = vpop.permute.xlu0 %372
    %374 = vrot.lane.b32.xlu0 %v318, 96
    %v375 = vpop.permute.xlu0 %374
    %376 = vrot.lane.b32.xlu0 %v323, 96
    %v377 = vpop.permute.xlu0 %376
    %378 = vrot.lane.b32.xlu0 %v328, 96
    %v379 = vpop.permute.xlu0 %378
    %v396 = vadd.f32 %v349, 0.0
    %v397 = vadd.f32 %v351, 0.0
    %v398 = vadd.f32 %v253, %v353
    %v399 = vadd.f32 %v258, %v355
    %v400 = vadd.f32 %v263, %v357
    %v401 = vadd.f32 %v268, %v359
    %v402 = vadd.f32 %v273, %v361
    %v403 = vadd.f32 %v278, %v363
    %v404 = vadd.f32 %v283, %v365
    %v405 = vadd.f32 %v288, %v367
    %v406 = vadd.f32 %v293, %v369
    %v407 = vadd.f32 %v298, %v371
    %v408 = vadd.f32 %v303, %v373
    %v409 = vadd.f32 %v308, %v375
    %v410 = vadd.f32 %v313, %v377
    %v411 = vadd.f32 %v318, %v379
    %413 = vrot.lane.b32.xlu0 %v263, 64
    %v414 = vpop.permute.xlu0 %413
    %415 = vrot.lane.b32.xlu0 %v268, 64
    %v416 = vpop.permute.xlu0 %415
    %417 = vrot.lane.b32.xlu0 %v273, 64
    %v418 = vpop.permute.xlu0 %417
    %419 = vrot.lane.b32.xlu0 %v278, 64
    %v420 = vpop.permute.xlu0 %419
    %421 = vrot.lane.b32.xlu0 %v283, 64
    %v422 = vpop.permute.xlu0 %421
    %423 = vrot.lane.b32.xlu0 %v288, 64
    %v424 = vpop.permute.xlu0 %423
    %425 = vrot.lane.b32.xlu0 %v293, 64
    %v426 = vpop.permute.xlu0 %425
    %427 = vrot.lane.b32.xlu0 %v298, 64
    %v428 = vpop.permute.xlu0 %427
    %429 = vrot.lane.b32.xlu0 %v303, 64
    %v430 = vpop.permute.xlu0 %429
    %431 = vrot.lane.b32.xlu0 %v308, 64
    %v432 = vpop.permute.xlu0 %431
    %433 = vrot.lane.b32.xlu0 %v313, 64
    %v434 = vpop.permute.xlu0 %433
    %435 = vrot.lane.b32.xlu0 %v318, 64
    %v436 = vpop.permute.xlu0 %435
    %437 = vrot.lane.b32.xlu0 %v323, 64
    %v438 = vpop.permute.xlu0 %437
    %439 = vrot.lane.b32.xlu0 %v328, 64
    %v440 = vpop.permute.xlu0 %439
    %441 = vrot.lane.b32.xlu0 0.0, 64
    %v442 = vpop.permute.xlu0 %441
    %v458 = vadd.f32 %v396, %v414
    %v459 = vadd.f32 %v397, %v416
    %v460 = vadd.f32 %v398, %v418
    %v461 = vadd.f32 %v399, %v420
    %v462 = vadd.f32 %v400, %v422
    %v463 = vadd.f32 %v401, %v424
    %v464 = vadd.f32 %v402, %v426
    %v465 = vadd.f32 %v403, %v428
    %v466 = vadd.f32 %v404, %v430
    %v467 = vadd.f32 %v405, %v432
    %v468 = vadd.f32 %v406, %v434
    %v469 = vadd.f32 %v407, %v436
    %v470 = vadd.f32 %v408, %v438
    %v471 = vadd.f32 %v409, %v440
    %v472 = vadd.f32 %v410, %v442
    %v473 = vadd.f32 %v411, %v442
    %v474 = vlaneseq
    %v475 = vshrl.u32 %v474, 7
    %v476 = vsub.s32 0, %v475
    %v477 = vrot.slane %v331, %v476
    %v478 = vadd.f32 %v458, %v477
    %v479 = vadd.f32 %v459, %v477
    %v480 = vadd.f32 %v460, %v477
    %v481 = vadd.f32 %v461, %v477
    %v482 = vadd.f32 %v462, %v477
    %v483 = vadd.f32 %v463, %v477
    %v484 = vadd.f32 %v464, %v477
    %v485 = vadd.f32 %v465, %v477
    %v486 = vadd.f32 %v466, %v477
    %v487 = vadd.f32 %v467, %v477
    %v488 = vadd.f32 %v468, %v477
    %v489 = vadd.f32 %v469, %v477
    %v490 = vadd.f32 %v470, %v477
    %v491 = vadd.f32 %v471, %v477
    %v492 = vadd.f32 %v472, %v477
    %v493 = vadd.f32 %v473, %v477
    %vm494 = vcmp.gt.f32.partialorder %v478, 0.0
    %vm495 = vcmp.gt.f32.partialorder %v479, 0.0
    %vm496 = vcmp.gt.f32.partialorder %v480, 0.0
    %vm497 = vcmp.gt.f32.partialorder %v481, 0.0
    %vm498 = vcmp.gt.f32.partialorder %v482, 0.0
    %vm499 = vcmp.gt.f32.partialorder %v483, 0.0
    %vm500 = vcmp.gt.f32.partialorder %v484, 0.0
    %vm501 = vcmp.gt.f32.partialorder %v485, 0.0
    %vm502 = vcmp.gt.f32.partialorder %v486, 0.0
    %vm503 = vcmp.gt.f32.partialorder %v487, 0.0
    %vm504 = vcmp.gt.f32.partialorder %v488, 0.0
    %vm505 = vcmp.gt.f32.partialorder %v489, 0.0
    %vm506 = vcmp.gt.f32.partialorder %v490, 0.0
    %vm507 = vcmp.gt.f32.partialorder %v491, 0.0
    %vm508 = vcmp.gt.f32.partialorder %v492, 0.0
    %vm509 = vcmp.gt.f32.partialorder %v493, 0.0
    %v510 = vmin.f32 %v478, 0.0
    %v511 = vmin.f32 %v479, 0.0
    %v512 = vmin.f32 %v480, 0.0
    %v513 = vmin.f32 %v481, 0.0
    %v514 = vmin.f32 %v482, 0.0
    %v515 = vmin.f32 %v483, 0.0
    %v516 = vmin.f32 %v484, 0.0
    %v517 = vmin.f32 %v485, 0.0
    %v518 = vmin.f32 %v486, 0.0
    %v519 = vmin.f32 %v487, 0.0
    %v520 = vmin.f32 %v488, 0.0
    %v521 = vmin.f32 %v489, 0.0
    %v522 = vmin.f32 %v490, 0.0
    %v523 = vmin.f32 %v491, 0.0
    %v524 = vmin.f32 %v492, 0.0
    %v525 = vmin.f32 %v493, 0.0
    %v526 = vmul.f32 %v510, 1.442695
    %v527 = vpow.pop %v526
    %v528 = vmul.f32 %v511, 1.442695
    %v529 = vpow.pop %v528
    %v530 = vmul.f32 %v512, 1.442695
    %v531 = vpow.pop %v530
    %v532 = vmul.f32 %v513, 1.442695
    %v533 = vpow.pop %v532
    %v534 = vmul.f32 %v514, 1.442695
    %v535 = vpow.pop %v534
    %v536 = vmul.f32 %v515, 1.442695
    %v537 = vpow.pop %v536
    %v538 = vmul.f32 %v516, 1.442695
    %v539 = vpow.pop %v538
    %v540 = vmul.f32 %v517, 1.442695
    %v541 = vpow.pop %v540
    %v542 = vmul.f32 %v518, 1.442695
    %v543 = vpow.pop %v542
    %v544 = vmul.f32 %v519, 1.442695
    %v545 = vpow.pop %v544
    %v546 = vmul.f32 %v520, 1.442695
    %v547 = vpow.pop %v546
    %v548 = vmul.f32 %v521, 1.442695
    %v549 = vpow.pop %v548
    %v550 = vmul.f32 %v522, 1.442695
    %v551 = vpow.pop %v550
    %v552 = vmul.f32 %v523, 1.442695
    %v553 = vpow.pop %v552
    %v554 = vmul.f32 %v524, 1.442695
    %v555 = vpow.pop %v554
    %v556 = vmul.f32 %v525, 1.442695
    %v557 = vpow.pop %v556
    %v558 = vsub.f32 %v527, 1.0
    %v559 = vsub.f32 %v529, 1.0
    %v560 = vsub.f32 %v531, 1.0
    %v561 = vsub.f32 %v533, 1.0
    %v562 = vsub.f32 %v535, 1.0
    %v563 = vsub.f32 %v537, 1.0
    %v564 = vsub.f32 %v539, 1.0
    %v565 = vsub.f32 %v541, 1.0
    %v566 = vsub.f32 %v543, 1.0
    %v567 = vsub.f32 %v545, 1.0
    %v568 = vsub.f32 %v547, 1.0
    %v569 = vsub.f32 %v549, 1.0
    %v570 = vsub.f32 %v551, 1.0
    %v571 = vsub.f32 %v553, 1.0
    %v572 = vsub.f32 %v555, 1.0
    %v573 = vsub.f32 %v557, 1.0
    %v574 = vsel %vm494, %v478, %v558
    %v575 = vsel %vm495, %v479, %v559
    %v576 = vsel %vm496, %v480, %v560
    %v577 = vsel %vm497, %v481, %v561
    %v578 = vsel %vm498, %v482, %v562
    %v579 = vsel %vm499, %v483, %v563
    %v580 = vsel %vm500, %v484, %v564
    %v581 = vsel %vm501, %v485, %v565
    %v582 = vsel %vm502, %v486, %v566
    %v583 = vsel %vm503, %v487, %v567
    %v584 = vsel %vm504, %v488, %v568
    %v585 = vsel %vm505, %v489, %v569
    %v586 = vsel %vm506, %v490, %v570
    %v587 = vsel %vm507, %v491, %v571
    %v588 = vsel %vm508, %v492, %v572
    %v589 = vsel %vm509, %v493, %v573
    %v590 = vld [vmem:[#allocation2 + $0x28] sm:$0xff]
    %v591 = vld [vmem:[#allocation2 + $0x30] sm:$0xff]
    %v592 = vld [vmem:[#allocation2 + $0x38] sm:$0xff]
    %v593 = vld [vmem:[#allocation2 + $0x40] sm:$0xff]
    %vm594 = vcmask 261120
    %v596 = vsel %vm594, %v574, 0
    %v599 = vsel %vm594, %v575, 0
    %v602 = vsel %vm594, %v576, 0
    %v605 = vsel %vm594, %v577, 0
    %v608 = vsel %vm594, %v578, 0
    %v611 = vsel %vm594, %v579, 0
    %v614 = vsel %vm594, %v580, 0
    %v617 = vsel %vm594, %v581, 0
    %v620 = vsel %vm594, %v582, 0
    %v623 = vsel %vm594, %v583, 0
    %v626 = vsel %vm594, %v584, 0
    %v629 = vsel %vm594, %v585, 0
    %v632 = vsel %vm594, %v586, 0
    %v635 = vsel %vm594, %v587, 0
    %v638 = vsel %vm594, %v588, 0
    %v641 = vsel %vm594, %v589, 0
    %643 = vmatprep.subr.mxu0 0.0
    %644 = vmatpush1.msra.mxu0 %v590
    %645 = vmatprep.subr.mxu0 0.0
    %646 = vmatpush1.msra.mxu0 %v591
    %647 = vmatprep.subr.mxu0 0.0
    %648 = vmatpush1.msra.mxu0 %v592
    %649 = vmatprep.subr.mxu0 0.0
    %650 = vmatpush1.msra.mxu0 %v593
    %651 = vmatprep.subr.mxu0 0.0
    %652 = vmatpush1.msra.mxu0 0.0
    %653 = vmatprep.subr.mxu0 0.0
    %654 = vmatpush1.msra.mxu0 0.0
    %655 = vmatprep.subr.mxu0 0.0
    %656 = vmatpush1.msra.mxu0 0.0
    %657 = vmatprep.subr.mxu0 0.0
    %658 = vmatpush1.msra.mxu0 0.0
    %659 = vmatprep.subr.mxu0 0.0
    %660 = vmatpush1.msra.mxu0 0.0
    %661 = vmatprep.subr.mxu0 0.0
    %662 = vmatpush1.msra.mxu0 0.0
    %663 = vmatprep.subr.mxu0 0.0
    %664 = vmatpush1.msra.mxu0 0.0
    %665 = vmatprep.subr.mxu0 0.0
    %666 = vmatpush1.msra.mxu0 0.0
    %667 = vmatprep.subr.mxu0 0.0
    %668 = vmatpush1.msra.mxu0 0.0
    %669 = vmatprep.subr.mxu0 0.0
    %670 = vmatpush1.msra.mxu0 0.0
    %671 = vmatprep.subr.mxu0 0.0
    %672 = vmatpush1.msra.mxu0 0.0
    %673 = vmatprep.subr.mxu0 0.0
    %674 = vmatpush1.msra.mxu0 0.0
    %675 = vmatprep.subr.mxu0 0.0
    %676 = vmatpush1.msra.mxu0 0.0
    %677 = vmatprep.subr.mxu0 0.0
    %678 = vmatpush1.msra.mxu0 0.0
    %679 = vmatprep.subr.mxu0 0.0
    %680 = vmatpush1.msra.mxu0 0.0
    %681 = vmatprep.subr.mxu0 0.0
    %682 = vmatpush1.msra.mxu0 0.0
    %683 = vmatprep.subr.mxu0 0.0
    %684 = vmatpush1.msra.mxu0 0.0
    %685 = vmatprep.subr.mxu0 0.0
    %686 = vmatpush1.msra.mxu0 0.0
    %687 = vmatprep.subr.mxu0 0.0
    %688 = vmatpush1.msra.mxu0 0.0
    %689 = vmatprep.subr.mxu0 0.0
    %690 = vmatpush1.msra.mxu0 0.0
    %691 = vmatprep.subr.mxu0 0.0
    %692 = vmatpush1.msra.mxu0 0.0
    %693 = vmatprep.subr.mxu0 0.0
    %694 = vmatpush1.msra.mxu0 0.0
    %695 = vmatprep.subr.mxu0 0.0
    %696 = vmatpush1.msra.mxu0 0.0
    %697 = vmatprep.subr.mxu0 0.0
    %698 = vmatpush1.msra.mxu0 0.0
    %699 = vmatprep.subr.mxu0 0.0
    %700 = vmatpush1.msra.mxu0 0.0
    %701 = vmatprep.subr.mxu0 0.0
    %702 = vmatpush1.msra.mxu0 0.0
    %703 = vmatprep.subr.mxu0 0.0
    %704 = vmatpush1.msra.mxu0 0.0
    %705 = vmatprep.subr.mxu0 0.0
    %706 = vmatpush1.msra.mxu0 0.0
    %707 = vmatprep.mubr.f32.mxu0 0.0
    %708 = vmatmul.mubr.f32.gmra.mrb[0].mxu0 %v596
    %v709 = vpop.f32.mrb[0].mxu0
    %v710 = vadd.f32 0.0, %v709
    %v711 = vpop.f32.mrb[0].mxu0
    %712 = vmatprep.mubr.f32.mxu0 0.0
    %713 = vmatmul.mubr.f32.gmra.mrb[0].mxu0 %v599
    %v714 = vpop.f32.mrb[0].mxu0
    %v715 = vadd.f32 0.0, %v714
    %v716 = vpop.f32.mrb[0].mxu0
    %717 = vmatprep.mubr.f32.mxu0 0.0
    %718 = vmatmul.mubr.f32.gmra.mrb[0].mxu0 %v602
    %v719 = vpop.f32.mrb[0].mxu0
    %v720 = vadd.f32 0.0, %v719
    %v721 = vpop.f32.mrb[0].mxu0
    %722 = vmatprep.mubr.f32.mxu0 0.0
    %723 = vmatmul.mubr.f32.gmra.mrb[0].mxu0 %v605
    %v724 = vpop.f32.mrb[0].mxu0
    %v725 = vadd.f32 0.0, %v724
    %v726 = vpop.f32.mrb[0].mxu0
    %727 = vmatprep.mubr.f32.mxu0 0.0
    %728 = vmatmul.mubr.f32.gmra.mrb[0].mxu0 %v608
    %v729 = vpop.f32.mrb[0].mxu0
    %v730 = vadd.f32 0.0, %v729
    %v731 = vpop.f32.mrb[0].mxu0
    %732 = vmatprep.mubr.f32.mxu0 0.0
    %733 = vmatmul.mubr.f32.gmra.mrb[0].mxu0 %v611
    %v734 = vpop.f32.mrb[0].mxu0
    %v735 = vadd.f32 0.0, %v734
    %v736 = vpop.f32.mrb[0].mxu0
    %737 = vmatprep.mubr.f32.mxu0 0.0
    %738 = vmatmul.mubr.f32.gmra.mrb[0].mxu0 %v614
    %v739 = vpop.f32.mrb[0].mxu0
    %v740 = vadd.f32 0.0, %v739
    %v741 = vpop.f32.mrb[0].mxu0
    %742 = vmatprep.mubr.f32.mxu0 0.0
    %743 = vmatmul.mubr.f32.gmra.mrb[0].mxu0 %v617
    %v744 = vpop.f32.mrb[0].mxu0
    %v745 = vadd.f32 0.0, %v744
    %v746 = vpop.f32.mrb[0].mxu0
    %747 = vmatprep.mubr.f32.mxu0 0.0
    %748 = vmatmul.mubr.f32.gmra.mrb[0].mxu0 %v620
    %v749 = vpop.f32.mrb[0].mxu0
    %v750 = vadd.f32 0.0, %v749
    %v751 = vpop.f32.mrb[0].mxu0
    %752 = vmatprep.mubr.f32.mxu0 0.0
    %753 = vmatmul.mubr.f32.gmra.mrb[0].mxu0 %v623
    %v754 = vpop.f32.mrb[0].mxu0
    %v755 = vadd.f32 0.0, %v754
    %v756 = vpop.f32.mrb[0].mxu0
    %757 = vmatprep.mubr.f32.mxu0 0.0
    %758 = vmatmul.mubr.f32.gmra.mrb[0].mxu0 %v626
    %v759 = vpop.f32.mrb[0].mxu0
    %v760 = vadd.f32 0.0, %v759
    %v761 = vpop.f32.mrb[0].mxu0
    %762 = vmatprep.mubr.f32.mxu0 0.0
    %763 = vmatmul.mubr.f32.gmra.mrb[0].mxu0 %v629
    %v764 = vpop.f32.mrb[0].mxu0
    %v765 = vadd.f32 0.0, %v764
    %v766 = vpop.f32.mrb[0].mxu0
    %767 = vmatprep.mubr.f32.mxu0 0.0
    %768 = vmatmul.mubr.f32.gmra.mrb[0].mxu0 %v632
    %v769 = vpop.f32.mrb[0].mxu0
    %v770 = vadd.f32 0.0, %v769
    %v771 = vpop.f32.mrb[0].mxu0
    %772 = vmatprep.mubr.f32.mxu0 0.0
    %773 = vmatmul.mubr.f32.gmra.mrb[0].mxu0 %v635
    %v774 = vpop.f32.mrb[0].mxu0
    %v775 = vadd.f32 0.0, %v774
    %v776 = vpop.f32.mrb[0].mxu0
    %777 = vmatprep.mubr.f32.mxu0 0.0
    %778 = vmatmul.mubr.f32.gmra.mrb[0].mxu0 %v638
    %v779 = vpop.f32.mrb[0].mxu0
    %v780 = vadd.f32 0.0, %v779
    %v781 = vpop.f32.mrb[0].mxu0
    %782 = vmatprep.mubr.f32.mxu0 0.0
    %783 = vmatmul.mubr.f32.gmra.mrb[0].mxu0 %v641
    %v784 = vpop.f32.mrb[0].mxu0
    %v785 = vadd.f32 0.0, %v784
    %v786 = vpop.f32.mrb[0].mxu0
    %787 = vdwg.mxu0
    %v788 = vld [vmem:[#allocation2 + $0x48] sm:$0x1]
    %805 = vrot.lane.b32.xlu0 %v710, 120
    %v806 = vpop.permute.xlu0 %805
    %807 = vrot.lane.b32.xlu0 %v715, 120
    %v808 = vpop.permute.xlu0 %807
    %809 = vrot.lane.b32.xlu0 %v720, 120
    %v810 = vpop.permute.xlu0 %809
    %811 = vrot.lane.b32.xlu0 %v725, 120
    %v812 = vpop.permute.xlu0 %811
    %813 = vrot.lane.b32.xlu0 %v730, 120
    %v814 = vpop.permute.xlu0 %813
    %815 = vrot.lane.b32.xlu0 %v735, 120
    %v816 = vpop.permute.xlu0 %815
    %817 = vrot.lane.b32.xlu0 %v740, 120
    %v818 = vpop.permute.xlu0 %817
    %819 = vrot.lane.b32.xlu0 %v745, 120
    %v820 = vpop.permute.xlu0 %819
    %821 = vrot.lane.b32.xlu0 %v750, 120
    %v822 = vpop.permute.xlu0 %821
    %823 = vrot.lane.b32.xlu0 %v755, 120
    %v824 = vpop.permute.xlu0 %823
    %825 = vrot.lane.b32.xlu0 %v760, 120
    %v826 = vpop.permute.xlu0 %825
    %827 = vrot.lane.b32.xlu0 %v765, 120
    %v828 = vpop.permute.xlu0 %827
    %829 = vrot.lane.b32.xlu0 %v770, 120
    %v830 = vpop.permute.xlu0 %829
    %831 = vrot.lane.b32.xlu0 %v775, 120
    %v832 = vpop.permute.xlu0 %831
    %833 = vrot.lane.b32.xlu0 %v780, 120
    %v834 = vpop.permute.xlu0 %833
    %835 = vrot.lane.b32.xlu0 %v785, 120
    %v836 = vpop.permute.xlu0 %835
    %v853 = vadd.f32 %v806, 0.0
    %v854 = vadd.f32 %v808, 0.0
    %v855 = vadd.f32 %v710, %v810
    %v856 = vadd.f32 %v715, %v812
    %v857 = vadd.f32 %v720, %v814
    %v858 = vadd.f32 %v725, %v816
    %v859 = vadd.f32 %v730, %v818
    %v860 = vadd.f32 %v735, %v820
    %v861 = vadd.f32 %v740, %v822
    %v862 = vadd.f32 %v745, %v824
    %v863 = vadd.f32 %v750, %v826
    %v864 = vadd.f32 %v755, %v828
    %v865 = vadd.f32 %v760, %v830
    %v866 = vadd.f32 %v765, %v832
    %v867 = vadd.f32 %v770, %v834
    %v868 = vadd.f32 %v775, %v836
    %869 = vrot.lane.b32.xlu0 %v720, 112
    %v870 = vpop.permute.xlu0 %869
    %871 = vrot.lane.b32.xlu0 %v725, 112
    %v872 = vpop.permute.xlu0 %871
    %873 = vrot.lane.b32.xlu0 %v730, 112
    %v874 = vpop.permute.xlu0 %873
    %875 = vrot.lane.b32.xlu0 %v735, 112
    %v876 = vpop.permute.xlu0 %875
    %877 = vrot.lane.b32.xlu0 %v740, 112
    %v878 = vpop.permute.xlu0 %877
    %879 = vrot.lane.b32.xlu0 %v745, 112
    %v880 = vpop.permute.xlu0 %879
    %881 = vrot.lane.b32.xlu0 %v750, 112
    %v882 = vpop.permute.xlu0 %881
    %883 = vrot.lane.b32.xlu0 %v755, 112
    %v884 = vpop.permute.xlu0 %883
    %885 = vrot.lane.b32.xlu0 %v760, 112
    %v886 = vpop.permute.xlu0 %885
    %887 = vrot.lane.b32.xlu0 %v765, 112
    %v888 = vpop.permute.xlu0 %887
    %889 = vrot.lane.b32.xlu0 %v770, 112
    %v890 = vpop.permute.xlu0 %889
    %891 = vrot.lane.b32.xlu0 %v775, 112
    %v892 = vpop.permute.xlu0 %891
    %893 = vrot.lane.b32.xlu0 %v780, 112
    %v894 = vpop.permute.xlu0 %893
    %895 = vrot.lane.b32.xlu0 %v785, 112
    %v896 = vpop.permute.xlu0 %895
    %897 = vrot.lane.b32.xlu0 0.0, 112
    %v898 = vpop.permute.xlu0 %897
    %v914 = vadd.f32 %v853, %v870
    %v915 = vadd.f32 %v854, %v872
    %v916 = vadd.f32 %v855, %v874
    %v917 = vadd.f32 %v856, %v876
    %v918 = vadd.f32 %v857, %v878
    %v919 = vadd.f32 %v858, %v880
    %v920 = vadd.f32 %v859, %v882
    %v921 = vadd.f32 %v860, %v884
    %v922 = vadd.f32 %v861, %v886
    %v923 = vadd.f32 %v862, %v888
    %v924 = vadd.f32 %v863, %v890
    %v925 = vadd.f32 %v864, %v892
    %v926 = vadd.f32 %v865, %v894
    %v927 = vadd.f32 %v866, %v896
    %v928 = vadd.f32 %v867, %v898
    %v929 = vadd.f32 %v868, %v898
    %v930 = vlaneseq
    %v931 = vshrl.u32 %v930, 7
    %v932 = vsub.s32 0, %v931
    %v933 = vrot.slane %v788, %v932
    %v934 = vadd.f32 %v914, %v933
    %v935 = vadd.f32 %v915, %v933
    %v936 = vadd.f32 %v916, %v933
    %v937 = vadd.f32 %v917, %v933
    %v938 = vadd.f32 %v918, %v933
    %v939 = vadd.f32 %v919, %v933
    %v940 = vadd.f32 %v920, %v933
    %v941 = vadd.f32 %v921, %v933
    %v942 = vadd.f32 %v922, %v933
    %v943 = vadd.f32 %v923, %v933
    %v944 = vadd.f32 %v924, %v933
    %v945 = vadd.f32 %v925, %v933
    %v946 = vadd.f32 %v926, %v933
    %v947 = vadd.f32 %v927, %v933
    %v948 = vadd.f32 %v928, %v933
    %v949 = vadd.f32 %v929, %v933
    %vm950 = vcmp.gt.f32.partialorder %v934, 0.0
    %vm951 = vcmp.gt.f32.partialorder %v935, 0.0
    %vm952 = vcmp.gt.f32.partialorder %v936, 0.0
    %vm953 = vcmp.gt.f32.partialorder %v937, 0.0
    %vm954 = vcmp.gt.f32.partialorder %v938, 0.0
    %vm955 = vcmp.gt.f32.partialorder %v939, 0.0
    %vm956 = vcmp.gt.f32.partialorder %v940, 0.0
    %vm957 = vcmp.gt.f32.partialorder %v941, 0.0
    %vm958 = vcmp.gt.f32.partialorder %v942, 0.0
    %vm959 = vcmp.gt.f32.partialorder %v943, 0.0
    %vm960 = vcmp.gt.f32.partialorder %v944, 0.0
    %vm961 = vcmp.gt.f32.partialorder %v945, 0.0
    %vm962 = vcmp.gt.f32.partialorder %v946, 0.0
    %vm963 = vcmp.gt.f32.partialorder %v947, 0.0
    %vm964 = vcmp.gt.f32.partialorder %v948, 0.0
    %vm965 = vcmp.gt.f32.partialorder %v949, 0.0
    %v966 = vmin.f32 %v934, 0.0
    %v967 = vmin.f32 %v935, 0.0
    %v968 = vmin.f32 %v936, 0.0
    %v969 = vmin.f32 %v937, 0.0
    %v970 = vmin.f32 %v938, 0.0
    %v971 = vmin.f32 %v939, 0.0
    %v972 = vmin.f32 %v940, 0.0
    %v973 = vmin.f32 %v941, 0.0
    %v974 = vmin.f32 %v942, 0.0
    %v975 = vmin.f32 %v943, 0.0
    %v976 = vmin.f32 %v944, 0.0
    %v977 = vmin.f32 %v945, 0.0
    %v978 = vmin.f32 %v946, 0.0
    %v979 = vmin.f32 %v947, 0.0
    %v980 = vmin.f32 %v948, 0.0
    %v981 = vmin.f32 %v949, 0.0
    %v982 = vmul.f32 %v966, 1.442695
    %v983 = vpow.pop %v982
    %v984 = vmul.f32 %v967, 1.442695
    %v985 = vpow.pop %v984
    %v986 = vmul.f32 %v968, 1.442695
    %v987 = vpow.pop %v986
    %v988 = vmul.f32 %v969, 1.442695
    %v989 = vpow.pop %v988
    %v990 = vmul.f32 %v970, 1.442695
    %v991 = vpow.pop %v990
    %v992 = vmul.f32 %v971, 1.442695
    %v993 = vpow.pop %v992
    %v994 = vmul.f32 %v972, 1.442695
    %v995 = vpow.pop %v994
    %v996 = vmul.f32 %v973, 1.442695
    %v997 = vpow.pop %v996
    %v998 = vmul.f32 %v974, 1.442695
    %v999 = vpow.pop %v998
    %v1000 = vmul.f32 %v975, 1.442695
    %v1001 = vpow.pop %v1000
    %v1002 = vmul.f32 %v976, 1.442695
    %v1003 = vpow.pop %v1002
    %v1004 = vmul.f32 %v977, 1.442695
    %v1005 = vpow.pop %v1004
    %v1006 = vmul.f32 %v978, 1.442695
    %v1007 = vpow.pop %v1006
    %v1008 = vmul.f32 %v979, 1.442695
    %v1009 = vpow.pop %v1008
    %v1010 = vmul.f32 %v980, 1.442695
    %v1011 = vpow.pop %v1010
    %v1012 = vmul.f32 %v981, 1.442695
    %v1013 = vpow.pop %v1012
    %v1014 = vsub.f32 %v983, 1.0
    %v1015 = vsub.f32 %v985, 1.0
    %v1016 = vsub.f32 %v987, 1.0
    %v1017 = vsub.f32 %v989, 1.0
    %v1018 = vsub.f32 %v991, 1.0
    %v1019 = vsub.f32 %v993, 1.0
    %v1020 = vsub.f32 %v995, 1.0
    %v1021 = vsub.f32 %v997, 1.0
    %v1022 = vsub.f32 %v999, 1.0
    %v1023 = vsub.f32 %v1001, 1.0
    %v1024 = vsub.f32 %v1003, 1.0
    %v1025 = vsub.f32 %v1005, 1.0
    %v1026 = vsub.f32 %v1007, 1.0
    %v1027 = vsub.f32 %v1009, 1.0
    %v1028 = vsub.f32 %v1011, 1.0
    %v1029 = vsub.f32 %v1013, 1.0
    %v1030 = vsel %vm950, %v934, %v1014
    %v1031 = vsel %vm951, %v935, %v1015
    %v1032 = vsel %vm952, %v936, %v1016
    %v1033 = vsel %vm953, %v937, %v1017
    %v1034 = vsel %vm954, %v938, %v1018
    %v1035 = vsel %vm955, %v939, %v1019
    %v1036 = vsel %vm956, %v940, %v1020
    %v1037 = vsel %vm957, %v941, %v1021
    %v1038 = vsel %vm958, %v942, %v1022
    %v1039 = vsel %vm959, %v943, %v1023
    %v1040 = vsel %vm960, %v944, %v1024
    %v1041 = vsel %vm961, %v945, %v1025
    %v1042 = vsel %vm962, %v946, %v1026
    %v1043 = vsel %vm963, %v947, %v1027
    %v1044 = vsel %vm964, %v948, %v1028
    %v1045 = vsel %vm965, %v949, %v1029
    %vm1046 = vcmask 64512
    %v1047 = vsel %vm1046, %v1030, -inf
    %v1048 = vsel %vm1046, %v1032, -inf
    %v1049 = vsel %vm1046, %v1034, -inf
    %v1050 = vmax.f32 %v1047, %v1049
    %v1051 = vsel %vm1046, %v1036, -inf
    %v1052 = vmax.f32 %v1048, %v1051
    %v1053 = vsel %vm1046, %v1038, -inf
    %v1054 = vmax.f32 %v1050, %v1053
    %v1055 = vsel %vm1046, %v1040, -inf
    %v1056 = vmax.f32 %v1052, %v1055
    %v1057 = vsel %vm1046, %v1042, -inf
    %v1058 = vmax.f32 %v1054, %v1057
    %v1059 = vsel %vm1046, %v1044, -inf
    %v1060 = vmax.f32 %v1056, %v1059
    %v1061 = vmax.f32 %v1058, %v1060
    %v1062 = vsel %vm1046, %v1031, -inf
    %v1063 = vsel %vm1046, %v1033, -inf
    %v1064 = vsel %vm1046, %v1035, -inf
    %v1065 = vmax.f32 %v1062, %v1064
    %v1066 = vsel %vm1046, %v1037, -inf
    %v1067 = vmax.f32 %v1063, %v1066
    %v1068 = vsel %vm1046, %v1039, -inf
    %v1069 = vmax.f32 %v1065, %v1068
    %v1070 = vsel %vm1046, %v1041, -inf
    %v1071 = vmax.f32 %v1067, %v1070
    %v1072 = vsel %vm1046, %v1043, -inf
    %v1073 = vmax.f32 %v1069, %v1072
    %v1074 = vsel %vm1046, %v1045, -inf
    %v1075 = vmax.f32 %v1071, %v1074
    %v1076 = vmax.f32 %v1073, %v1075
    %v1077 = vld [vmem:[%s0] sm:$0xff]
    %v1078 = vld [vmem:[%s0 + $0x8] sm:$0xff]
    %1079 = vset.pattern.permute.xlu0 0
    %1080 = vperm.xlu0 %1079, %v1077
    %v1081 = vpop.permute.xlu0 %1080
    %1082 = vset.pattern.permute.xlu0 0
    %1083 = vperm.xlu0 %1082, %v1078
    %v1084 = vpop.permute.xlu0 %1083
    %vm1085 = vcmp.eq.s32.totalorder %v1081, %v30
    %vm1086 = vcmp.eq.s32.totalorder %v1084, %v30
    %v1087 = vsel %vm1085, 1, 0
    %v1088 = vsel %vm1086, 1, 0
    %v1089 = vcvt.s32.f32 %v1087
    %v1090 = vcvt.s32.f32 %v1088
    %v1091 = vld [vmem:[#allocation2 + $0x50] sm:$0xff]
    %v1092 = vld [vmem:[#allocation2 + $0x58] sm:$0xff]
    %v1093 = vld [vmem:[#allocation2 + $0x60] sm:$0xff]
    %v1094 = vld [vmem:[#allocation2 + $0x68] sm:$0xff]
    %v1095 = vld [vmem:[#allocation2 + $0x70] sm:$0xff]
    %v1096 = vld [vmem:[#allocation2 + $0x78] sm:$0xff]
    %v1097 = vld [vmem:[#allocation2 + $0x80] sm:$0x3]
    %v1098 = vld [vmem:[#allocation2 + $0x88] sm:$0xff]
    %v1100 = vsel %vm1046, %v1061, 0
    %v1103 = vsel %vm1046, %v1076, 0
    %1105 = vmatprep.subr.mxu0 0.0
    %1106 = vmatpush1.msra.mxu0 %v1098
    %1107 = vmatprep.subr.mxu0 0.0
    %1108 = vmatpush1.msra.mxu0 0.0
    %1109 = vmatprep.subr.mxu0 0.0
    %1110 = vmatpush1.msra.mxu0 0.0
    %1111 = vmatprep.subr.mxu0 0.0
    %1112 = vmatpush1.msra.mxu0 0.0
    %1113 = vmatprep.subr.mxu0 0.0
    %1114 = vmatpush1.msra.mxu0 0.0
    %1115 = vmatprep.subr.mxu0 0.0
    %1116 = vmatpush1.msra.mxu0 0.0
    %1117 = vmatprep.subr.mxu0 0.0
    %1118 = vmatpush1.msra.mxu0 0.0
    %1119 = vmatprep.subr.mxu0 0.0
    %1120 = vmatpush1.msra.mxu0 0.0
    %1121 = vmatprep.subr.mxu0 0.0
    %1122 = vmatpush1.msra.mxu0 0.0
    %1123 = vmatprep.subr.mxu0 0.0
    %1124 = vmatpush1.msra.mxu0 0.0
    %1125 = vmatprep.subr.mxu0 0.0
    %1126 = vmatpush1.msra.mxu0 0.0
    %1127 = vmatprep.subr.mxu0 0.0
    %1128 = vmatpush1.msra.mxu0 0.0
    %1129 = vmatprep.subr.mxu0 0.0
    %1130 = vmatpush1.msra.mxu0 0.0
    %1131 = vmatprep.subr.mxu0 0.0
    %1132 = vmatpush1.msra.mxu0 0.0
    %1133 = vmatprep.subr.mxu0 0.0
    %1134 = vmatpush1.msra.mxu0 0.0
    %1135 = vmatprep.subr.mxu0 0.0
    %1136 = vmatpush1.msra.mxu0 0.0
    %1137 = vmatprep.subr.mxu0 0.0
    %1138 = vmatpush1.msra.mxu0 0.0
    %1139 = vmatprep.subr.mxu0 0.0
    %1140 = vmatpush1.msra.mxu0 0.0
    %1141 = vmatprep.subr.mxu0 0.0
    %1142 = vmatpush1.msra.mxu0 0.0
    %1143 = vmatprep.subr.mxu0 0.0
    %1144 = vmatpush1.msra.mxu0 0.0
    %1145 = vmatprep.subr.mxu0 0.0
    %1146 = vmatpush1.msra.mxu0 0.0
    %1147 = vmatprep.subr.mxu0 0.0
    %1148 = vmatpush1.msra.mxu0 0.0
    %1149 = vmatprep.subr.mxu0 0.0
    %1150 = vmatpush1.msra.mxu0 0.0
    %1151 = vmatprep.subr.mxu0 0.0
    %1152 = vmatpush1.msra.mxu0 0.0
    %1153 = vmatprep.subr.mxu0 0.0
    %1154 = vmatpush1.msra.mxu0 0.0
    %1155 = vmatprep.subr.mxu0 0.0
    %1156 = vmatpush1.msra.mxu0 0.0
    %1157 = vmatprep.subr.mxu0 0.0
    %1158 = vmatpush1.msra.mxu0 0.0
    %1159 = vmatprep.subr.mxu0 0.0
    %1160 = vmatpush1.msra.mxu0 0.0
    %1161 = vmatprep.subr.mxu0 0.0
    %1162 = vmatpush1.msra.mxu0 0.0
    %1163 = vmatprep.subr.mxu0 0.0
    %1164 = vmatpush1.msra.mxu0 0.0
    %1165 = vmatprep.subr.mxu0 0.0
    %1166 = vmatpush1.msra.mxu0 0.0
    %1167 = vmatprep.subr.mxu0 0.0
    %1168 = vmatpush1.msra.mxu0 0.0
    %1169 = vmatprep.mubr.f32.mxu0 0.0
    %1170 = vmatmul.mubr.f32.gmra.mrb[0].mxu0 %v1100
    %v1171 = vpop.f32.mrb[0].mxu0
    %v1172 = vadd.f32 0.0, %v1171
    %v1173 = vpop.f32.mrb[0].mxu0
    %1174 = vmatprep.mubr.f32.mxu0 0.0
    %1175 = vmatmul.mubr.f32.gmra.mrb[0].mxu0 %v1103
    %v1176 = vpop.f32.mrb[0].mxu0
    %v1177 = vadd.f32 0.0, %v1176
    %v1178 = vpop.f32.mrb[0].mxu0
    %1179 = vdwg.mxu0
    %vm1180 = vcmask 408576
    %v1182 = vsel %vm1180, %v1089, 0
    %v1185 = vsel %vm1180, %v1090, 0
    %vm1187 = vcmask 1041408
    %v1189 = vsel %vm1187, %v1097, 0
    %1191 = vmatprep.subr.mxu0 0.0
    %1192 = vmatpush1.msra.mxu0 %v1091
    %1193 = vmatprep.subr.mxu0 0.0
    %1194 = vmatpush1.msra.mxu0 %v1092
    %1195 = vmatprep.subr.mxu0 0.0
    %1196 = vmatpush1.msra.mxu0 %v1093
    %1197 = vmatprep.subr.mxu0 0.0
    %1198 = vmatpush1.msra.mxu0 %v1094
    %1199 = vmatprep.subr.mxu0 0.0
    %1200 = vmatpush1.msra.mxu0 %v1095
    %1201 = vmatprep.subr.mxu0 0.0
    %1202 = vmatpush1.msra.mxu0 %v1096
    %1203 = vmatprep.subr.mxu0 0.0
    %1204 = vmatpush1.msra.mxu0 %v1189
    %1205 = vmatprep.subr.mxu0 0.0
    %1206 = vmatpush1.msra.mxu0 0.0
    %1207 = vmatprep.subr.mxu0 0.0
    %1208 = vmatpush1.msra.mxu0 0.0
    %1209 = vmatprep.subr.mxu0 0.0
    %1210 = vmatpush1.msra.mxu0 0.0
    %1211 = vmatprep.subr.mxu0 0.0
    %1212 = vmatpush1.msra.mxu0 0.0
    %1213 = vmatprep.subr.mxu0 0.0
    %1214 = vmatpush1.msra.mxu0 0.0
    %1215 = vmatprep.subr.mxu0 0.0
    %1216 = vmatpush1.msra.mxu0 0.0
    %1217 = vmatprep.subr.mxu0 0.0
    %1218 = vmatpush1.msra.mxu0 0.0
    %1219 = vmatprep.subr.mxu0 0.0
    %1220 = vmatpush1.msra.mxu0 0.0
    %1221 = vmatprep.subr.mxu0 0.0
    %1222 = vmatpush1.msra.mxu0 0.0
    %1223 = vmatprep.subr.mxu0 0.0
    %1224 = vmatpush1.msra.mxu0 0.0
    %1225 = vmatprep.subr.mxu0 0.0
    %1226 = vmatpush1.msra.mxu0 0.0
    %1227 = vmatprep.subr.mxu0 0.0
    %1228 = vmatpush1.msra.mxu0 0.0
    %1229 = vmatprep.subr.mxu0 0.0
    %1230 = vmatpush1.msra.mxu0 0.0
    %1231 = vmatprep.subr.mxu0 0.0
    %1232 = vmatpush1.msra.mxu0 0.0
    %1233 = vmatprep.subr.mxu0 0.0
    %1234 = vmatpush1.msra.mxu0 0.0
    %1235 = vmatprep.subr.mxu0 0.0
    %1236 = vmatpush1.msra.mxu0 0.0
    %1237 = vmatprep.subr.mxu0 0.0
    %1238 = vmatpush1.msra.mxu0 0.0
    %1239 = vmatprep.subr.mxu0 0.0
    %1240 = vmatpush1.msra.mxu0 0.0
    %1241 = vmatprep.subr.mxu0 0.0
    %1242 = vmatpush1.msra.mxu0 0.0
    %1243 = vmatprep.subr.mxu0 0.0
    %1244 = vmatpush1.msra.mxu0 0.0
    %1245 = vmatprep.subr.mxu0 0.0
    %1246 = vmatpush1.msra.mxu0 0.0
    %1247 = vmatprep.subr.mxu0 0.0
    %1248 = vmatpush1.msra.mxu0 0.0
    %1249 = vmatprep.subr.mxu0 0.0
    %1250 = vmatpush1.msra.mxu0 0.0
    %1251 = vmatprep.subr.mxu0 0.0
    %1252 = vmatpush1.msra.mxu0 0.0
    %1253 = vmatprep.subr.mxu0 0.0
    %1254 = vmatpush1.msra.mxu0 0.0
    %1255 = vmatprep.mubr.f32.mxu0 0.0
    %1256 = vmatmul.mubr.f32.gmra.mrb[0].mxu0 %v1182
    %v1257 = vpop.f32.mrb[0].mxu0
    %v1258 = vadd.f32 %v1172, %v1257
    %v1259 = vpop.f32.mrb[0].mxu0
    %1260 = vmatprep.mubr.f32.mxu0 0.0
    %1261 = vmatmul.mubr.f32.gmra.mrb[0].mxu0 %v1185
    %v1262 = vpop.f32.mrb[0].mxu0
    %v1263 = vadd.f32 %v1177, %v1262
    %v1264 = vpop.f32.mrb[0].mxu0
    %1265 = vdwg.mxu0
    %v1266 = vld [vmem:[#allocation2 + $0xb0] sm:$0x1]
    %v1267 = vlaneseq
    %v1268 = vshrl.u32 %v1267, 7
    %v1269 = vsub.s32 0, %v1268
    %v1270 = vrot.slane %v1266, %v1269
    %v1271 = vadd.f32 %v1258, %v1270
    %v1272 = vadd.f32 %v1263, %v1270
    %vm1273 = vcmp.lt.s32.totalorder %v30, 0
    %v1274 = vsub.s32 0, %v30
    %v1275 = vsel %vm1273, %v1274, %v30
    %v1276 = vshrl.u32 %v1275, 5
    %v1277 = vand.u32 %v1275, 31
    %v1278 = vsub.s32 0, %v1277
    %v1279 = vsel %vm1273, %v1278, %v1277
    %vm1280 = vcmp.ne.s32.totalorder %v1279, 0
    %vm1281 = vcmp.lt.s32.totalorder %v1279, 0
    %vm1282 = vmand %vm1281, %vm1280
    %v1283 = vadd.s32 %v1279, 32
    %v1284 = vsel %vm1282, %v1283, %v1279
    %vm1285 = vcmp.lt.s32.totalorder %v1284, 16
    %v1286 = vsel %vm1285, 1, 0
    %vm1287 = vcmp.eq.s32.totalorder %v1286, 1
    %v1289 = vrot.slane %v1272, 6
    %v1291 = vsel %vm1287, %v1271, %v1289
    %v1292 = vrot.slane %v1272, 2
    %v1294 = vsel %vm1287, %v1271, %v1292
    %v1296 = vrot.slane %v1271, 6
    %v1298 = vsel %vm1287, %v1272, %v1296
    %v1299 = vrot.slane %v1271, 2
    %v1301 = vsel %vm1287, %v1272, %v1299
    %v1302 = vld [vmem:[#allocation2 + $0x90] sm:$0xff]
    %v1303 = vld [vmem:[#allocation2 + $0x98] sm:$0xff]
    %v1304 = vld [vmem:[#allocation2 + $0xa0] sm:$0xff]
    %v1305 = vld [vmem:[#allocation2 + $0xa8] sm:$0xff]
    %v1306 = vsel %vm594, 0.0, 0
    %1308 = vmatprep.subr.mxu0 0.0
    %1309 = vmatpush1.msra.mxu0 %v1302
    %1310 = vmatprep.subr.mxu0 0.0
    %1311 = vmatpush1.msra.mxu0 %v1303
    %1312 = vmatprep.subr.mxu0 0.0
    %1313 = vmatpush1.msra.mxu0 %v1304
    %1314 = vmatprep.subr.mxu0 0.0
    %1315 = vmatpush1.msra.mxu0 %v1305
    %1316 = vmatprep.subr.mxu0 0.0
    %1317 = vmatpush1.msra.mxu0 0.0
    %1318 = vmatprep.subr.mxu0 0.0
    %1319 = vmatpush1.msra.mxu0 0.0
    %1320 = vmatprep.subr.mxu0 0.0
    %1321 = vmatpush1.msra.mxu0 0.0
    %1322 = vmatprep.subr.mxu0 0.0
    %1323 = vmatpush1.msra.mxu0 0.0
    %1324 = vmatprep.subr.mxu0 0.0
    %1325 = vmatpush1.msra.mxu0 0.0
    %1326 = vmatprep.subr.mxu0 0.0
    %1327 = vmatpush1.msra.mxu0 0.0
    %1328 = vmatprep.subr.mxu0 0.0
    %1329 = vmatpush1.msra.mxu0 0.0
    %1330 = vmatprep.subr.mxu0 0.0
    %1331 = vmatpush1.msra.mxu0 0.0
    %1332 = vmatprep.subr.mxu0 0.0
    %1333 = vmatpush1.msra.mxu0 0.0
    %1334 = vmatprep.subr.mxu0 0.0
    %1335 = vmatpush1.msra.mxu0 0.0
    %1336 = vmatprep.subr.mxu0 0.0
    %1337 = vmatpush1.msra.mxu0 0.0
    %1338 = vmatprep.subr.mxu0 0.0
    %1339 = vmatpush1.msra.mxu0 0.0
    %1340 = vmatprep.subr.mxu0 0.0
    %1341 = vmatpush1.msra.mxu0 0.0
    %1342 = vmatprep.subr.mxu0 0.0
    %1343 = vmatpush1.msra.mxu0 0.0
    %1344 = vmatprep.subr.mxu0 0.0
    %1345 = vmatpush1.msra.mxu0 0.0
    %1346 = vmatprep.subr.mxu0 0.0
    %1347 = vmatpush1.msra.mxu0 0.0
    %1348 = vmatprep.subr.mxu0 0.0
    %1349 = vmatpush1.msra.mxu0 0.0
    %1350 = vmatprep.subr.mxu0 0.0
    %1351 = vmatpush1.msra.mxu0 0.0
    %1352 = vmatprep.subr.mxu0 0.0
    %1353 = vmatpush1.msra.mxu0 0.0
    %1354 = vmatprep.subr.mxu0 0.0
    %1355 = vmatpush1.msra.mxu0 0.0
    %1356 = vmatprep.subr.mxu0 0.0
    %1357 = vmatpush1.msra.mxu0 0.0
    %1358 = vmatprep.subr.mxu0 0.0
    %1359 = vmatpush1.msra.mxu0 0.0
    %1360 = vmatprep.subr.mxu0 0.0
    %1361 = vmatpush1.msra.mxu0 0.0
    %1362 = vmatprep.subr.mxu0 0.0
    %1363 = vmatpush1.msra.mxu0 0.0
    %1364 = vmatprep.subr.mxu0 0.0
    %1365 = vmatpush1.msra.mxu0 0.0
    %1366 = vmatprep.subr.mxu0 0.0
    %1367 = vmatpush1.msra.mxu0 0.0
    %1368 = vmatprep.subr.mxu0 0.0
    %1369 = vmatpush1.msra.mxu0 0.0
    %1370 = vmatprep.subr.mxu0 0.0
    %1371 = vmatpush1.msra.mxu0 0.0
    %1372 = vmatprep.mubr.f32.mxu0 0.0
    %1373 = vmatmul.mubr.f32.gmra.mrb[0].mxu0 %v1306
    %v1374 = vpop.f32.mrb[0].mxu0
    %v1375 = vadd.f32 0.0, %v1374
    %v1376 = vpop.f32.mrb[0].mxu0
    %1377 = vdwg.mxu0
    %v1378 = vadd.f32 %v1291, %v1375
    %v1379 = vxor.u32 %v1378, 2147483648
    %v1380 = vmul.f32 %v1379, 1.442695
    %v1381 = vpow.pop %v1380
    %v1382 = vadd.f32 %v1381, 1.0
    %v1383 = vrcp.pop %v1382
    %v1384 = vmul.f32 1.0, %v1383
    %v1385 = vtanh.pop %v1378
    %v1386 = vmul.f32 %v1384, 0.0
    %1388 = vrot.lane.b32.xlu0 %v1385, 32
    %v1389 = vpop.permute.xlu0 %1388
    %v1391 = vmul.f32 %v1384, %v1389
    %1393 = vrot.lane.b32.xlu0 %v1391, 32
    %v1394 = vpop.permute.xlu0 %1393
    %v1396 = vadd.f32 %v1386, %v1394
    %v1397 = vtanh.pop %v1396
    %1399 = vrot.lane.b32.xlu0 %v1397, 32
    %v1400 = vpop.permute.xlu0 %1399
    %v1402 = vmul.f32 %v1384, %v1400
    %1404 = vrot.lane.b32.xlu0 %v1402, 64
    %v1405 = vpop.permute.xlu0 %1404
    %v1406 = vsel %vm594, %v1405, 0
    %1408 = vmatprep.subr.mxu0 0.0
    %1409 = vmatpush1.msra.mxu0 %v1302
    %1410 = vmatprep.subr.mxu0 0.0
    %1411 = vmatpush1.msra.mxu0 %v1303
    %1412 = vmatprep.subr.mxu0 0.0
    %1413 = vmatpush1.msra.mxu0 %v1304
    %1414 = vmatprep.subr.mxu0 0.0
    %1415 = vmatpush1.msra.mxu0 %v1305
    %1416 = vmatprep.subr.mxu0 0.0
    %1417 = vmatpush1.msra.mxu0 0.0
    %1418 = vmatprep.subr.mxu0 0.0
    %1419 = vmatpush1.msra.mxu0 0.0
    %1420 = vmatprep.subr.mxu0 0.0
    %1421 = vmatpush1.msra.mxu0 0.0
    %1422 = vmatprep.subr.mxu0 0.0
    %1423 = vmatpush1.msra.mxu0 0.0
    %1424 = vmatprep.subr.mxu0 0.0
    %1425 = vmatpush1.msra.mxu0 0.0
    %1426 = vmatprep.subr.mxu0 0.0
    %1427 = vmatpush1.msra.mxu0 0.0
    %1428 = vmatprep.subr.mxu0 0.0
    %1429 = vmatpush1.msra.mxu0 0.0
    %1430 = vmatprep.subr.mxu0 0.0
    %1431 = vmatpush1.msra.mxu0 0.0
    %1432 = vmatprep.subr.mxu0 0.0
    %1433 = vmatpush1.msra.mxu0 0.0
    %1434 = vmatprep.subr.mxu0 0.0
    %1435 = vmatpush1.msra.mxu0 0.0
    %1436 = vmatprep.subr.mxu0 0.0
    %1437 = vmatpush1.msra.mxu0 0.0
    %1438 = vmatprep.subr.mxu0 0.0
    %1439 = vmatpush1.msra.mxu0 0.0
    %1440 = vmatprep.subr.mxu0 0.0
    %1441 = vmatpush1.msra.mxu0 0.0
    %1442 = vmatprep.subr.mxu0 0.0
    %1443 = vmatpush1.msra.mxu0 0.0
    %1444 = vmatprep.subr.mxu0 0.0
    %1445 = vmatpush1.msra.mxu0 0.0
    %1446 = vmatprep.subr.mxu0 0.0
    %1447 = vmatpush1.msra.mxu0 0.0
    %1448 = vmatprep.subr.mxu0 0.0
    %1449 = vmatpush1.msra.mxu0 0.0
    %1450 = vmatprep.subr.mxu0 0.0
    %1451 = vmatpush1.msra.mxu0 0.0
    %1452 = vmatprep.subr.mxu0 0.0
    %1453 = vmatpush1.msra.mxu0 0.0
    %1454 = vmatprep.subr.mxu0 0.0
    %1455 = vmatpush1.msra.mxu0 0.0
    %1456 = vmatprep.subr.mxu0 0.0
    %1457 = vmatpush1.msra.mxu0 0.0
    %1458 = vmatprep.subr.mxu0 0.0
    %1459 = vmatpush1.msra.mxu0 0.0
    %1460 = vmatprep.subr.mxu0 0.0
    %1461 = vmatpush1.msra.mxu0 0.0
    %1462 = vmatprep.subr.mxu0 0.0
    %1463 = vmatpush1.msra.mxu0 0.0
    %1464 = vmatprep.subr.mxu0 0.0
    %1465 = vmatpush1.msra.mxu0 0.0
    %1466 = vmatprep.subr.mxu0 0.0
    %1467 = vmatpush1.msra.mxu0 0.0
    %1468 = vmatprep.subr.mxu0 0.0
    %1469 = vmatpush1.msra.mxu0 0.0
    %1470 = vmatprep.subr.mxu0 0.0
    %1471 = vmatpush1.msra.mxu0 0.0
    %1472 = vmatprep.mubr.f32.mxu0 0.0
    %1473 = vmatmul.mubr.f32.gmra.mrb[0].mxu0 %v1406
    %v1474 = vpop.f32.mrb[0].mxu0
    %v1475 = vadd.f32 0.0, %v1474
    %v1476 = vpop.f32.mrb[0].mxu0
    %1477 = vdwg.mxu0
    %v1479 = vrot.slane %v1475, 6
    %v1481 = vadd.f32 %v1294, %v1479
    %v1482 = vxor.u32 %v1481, 2147483648
    %v1483 = vmul.f32 %v1482, 1.442695
    %v1484 = vpow.pop %v1483
    %v1485 = vadd.f32 %v1484, 1.0
    %v1486 = vrcp.pop %v1485
    %v1487 = vmul.f32 1.0, %v1486
    %v1488 = vtanh.pop %v1481
    %v1490 = vrot.slane %v1396, 6
    %v1492 = vmul.f32 %v1487, %v1490
    %1494 = vrot.lane.b32.xlu0 %v1488, 32
    %v1495 = vpop.permute.xlu0 %1494
    %v1497 = vmul.f32 %v1487, %v1495
    %1499 = vrot.lane.b32.xlu0 %v1497, 32
    %v1500 = vpop.permute.xlu0 %1499
    %v1502 = vadd.f32 %v1492, %v1500
    %v1503 = vtanh.pop %v1502
    %1505 = vrot.lane.b32.xlu0 %v1503, 32
    %v1506 = vpop.permute.xlu0 %1505
    %v1508 = vmul.f32 %v1487, %v1506
    %v1510 = vrot.slane %v1508, 2
    %1511 = vrot.lane.b32.xlu0 %v1510, 64
    %v1512 = vpop.permute.xlu0 %1511
    %v1513 = vsel %vm594, %v1512, 0
    %1515 = vmatprep.subr.mxu0 0.0
    %1516 = vmatpush1.msra.mxu0 %v1302
    %1517 = vmatprep.subr.mxu0 0.0
    %1518 = vmatpush1.msra.mxu0 %v1303
    %1519 = vmatprep.subr.mxu0 0.0
    %1520 = vmatpush1.msra.mxu0 %v1304
    %1521 = vmatprep.subr.mxu0 0.0
    %1522 = vmatpush1.msra.mxu0 %v1305
    %1523 = vmatprep.subr.mxu0 0.0
    %1524 = vmatpush1.msra.mxu0 0.0
    %1525 = vmatprep.subr.mxu0 0.0
    %1526 = vmatpush1.msra.mxu0 0.0
    %1527 = vmatprep.subr.mxu0 0.0
    %1528 = vmatpush1.msra.mxu0 0.0
    %1529 = vmatprep.subr.mxu0 0.0
    %1530 = vmatpush1.msra.mxu0 0.0
    %1531 = vmatprep.subr.mxu0 0.0
    %1532 = vmatpush1.msra.mxu0 0.0
    %1533 = vmatprep.subr.mxu0 0.0
    %1534 = vmatpush1.msra.mxu0 0.0
    %1535 = vmatprep.subr.mxu0 0.0
    %1536 = vmatpush1.msra.mxu0 0.0
    %1537 = vmatprep.subr.mxu0 0.0
    %1538 = vmatpush1.msra.mxu0 0.0
    %1539 = vmatprep.subr.mxu0 0.0
    %1540 = vmatpush1.msra.mxu0 0.0
    %1541 = vmatprep.subr.mxu0 0.0
    %1542 = vmatpush1.msra.mxu0 0.0
    %1543 = vmatprep.subr.mxu0 0.0
    %1544 = vmatpush1.msra.mxu0 0.0
    %1545 = vmatprep.subr.mxu0 0.0
    %1546 = vmatpush1.msra.mxu0 0.0
    %1547 = vmatprep.subr.mxu0 0.0
    %1548 = vmatpush1.msra.mxu0 0.0
    %1549 = vmatprep.subr.mxu0 0.0
    %1550 = vmatpush1.msra.mxu0 0.0
    %1551 = vmatprep.subr.mxu0 0.0
    %1552 = vmatpush1.msra.mxu0 0.0
    %1553 = vmatprep.subr.mxu0 0.0
    %1554 = vmatpush1.msra.mxu0 0.0
    %1555 = vmatprep.subr.mxu0 0.0
    %1556 = vmatpush1.msra.mxu0 0.0
    %1557 = vmatprep.subr.mxu0 0.0
    %1558 = vmatpush1.msra.mxu0 0.0
    %1559 = vmatprep.subr.mxu0 0.0
    %1560 = vmatpush1.msra.mxu0 0.0
    %1561 = vmatprep.subr.mxu0 0.0
    %1562 = vmatpush1.msra.mxu0 0.0
    %1563 = vmatprep.subr.mxu0 0.0
    %1564 = vmatpush1.msra.mxu0 0.0
    %1565 = vmatprep.subr.mxu0 0.0
    %1566 = vmatpush1.msra.mxu0 0.0
    %1567 = vmatprep.subr.mxu0 0.0
    %1568 = vmatpush1.msra.mxu0 0.0
    %1569 = vmatprep.subr.mxu0 0.0
    %1570 = vmatpush1.msra.mxu0 0.0
    %1571 = vmatprep.subr.mxu0 0.0
    %1572 = vmatpush1.msra.mxu0 0.0
    %1573 = vmatprep.subr.mxu0 0.0
    %1574 = vmatpush1.msra.mxu0 0.0
    %1575 = vmatprep.subr.mxu0 0.0
    %1576 = vmatpush1.msra.mxu0 0.0
    %1577 = vmatprep.subr.mxu0 0.0
    %1578 = vmatpush1.msra.mxu0 0.0
    %1579 = vmatprep.mubr.f32.mxu0 0.0
    %1580 = vmatmul.mubr.f32.gmra.mrb[0].mxu0 %v1513
    %v1581 = vpop.f32.mrb[0].mxu0
    %v1582 = vadd.f32 0.0, %v1581
    %v1583 = vpop.f32.mrb[0].mxu0
    %1584 = vdwg.mxu0
    %v1586 = vrot.slane %v1582, 4
    %v1588 = vadd.f32 %v1291, %v1586
    %v1589 = vxor.u32 %v1588, 2147483648
    %v1590 = vmul.f32 %v1589, 1.442695
    %v1591 = vpow.pop %v1590
    %v1592 = vadd.f32 %v1591, 1.0
    %v1593 = vrcp.pop %v1592
    %v1594 = vmul.f32 1.0, %v1593
    %v1595 = vtanh.pop %v1588
    %v1597 = vrot.slane %v1502, 6
    %v1599 = vmul.f32 %v1594, %v1597
    %1601 = vrot.lane.b32.xlu0 %v1595, 32
    %v1602 = vpop.permute.xlu0 %1601
    %v1604 = vmul.f32 %v1594, %v1602
    %1606 = vrot.lane.b32.xlu0 %v1604, 32
    %v1607 = vpop.permute.xlu0 %1606
    %v1609 = vadd.f32 %v1599, %v1607
    %v1610 = vtanh.pop %v1609
    %1612 = vrot.lane.b32.xlu0 %v1610, 32
    %v1613 = vpop.permute.xlu0 %1612
    %v1615 = vmul.f32 %v1594, %v1613
    %v1617 = vrot.slane %v1615, 4
    %1618 = vrot.lane.b32.xlu0 %v1617, 64
    %v1619 = vpop.permute.xlu0 %1618
    %v1620 = vsel %vm594, %v1619, 0
    %1622 = vmatprep.subr.mxu0 0.0
    %1623 = vmatpush1.msra.mxu0 %v1302
    %1624 = vmatprep.subr.mxu0 0.0
    %1625 = vmatpush1.msra.mxu0 %v1303
    %1626 = vmatprep.subr.mxu0 0.0
    %1627 = vmatpush1.msra.mxu0 %v1304
    %1628 = vmatprep.subr.mxu0 0.0
    %1629 = vmatpush1.msra.mxu0 %v1305
    %1630 = vmatprep.subr.mxu0 0.0
    %1631 = vmatpush1.msra.mxu0 0.0
    %1632 = vmatprep.subr.mxu0 0.0
    %1633 = vmatpush1.msra.mxu0 0.0
    %1634 = vmatprep.subr.mxu0 0.0
    %1635 = vmatpush1.msra.mxu0 0.0
    %1636 = vmatprep.subr.mxu0 0.0
    %1637 = vmatpush1.msra.mxu0 0.0
    %1638 = vmatprep.subr.mxu0 0.0
    %1639 = vmatpush1.msra.mxu0 0.0
    %1640 = vmatprep.subr.mxu0 0.0
    %1641 = vmatpush1.msra.mxu0 0.0
    %1642 = vmatprep.subr.mxu0 0.0
    %1643 = vmatpush1.msra.mxu0 0.0
    %1644 = vmatprep.subr.mxu0 0.0
    %1645 = vmatpush1.msra.mxu0 0.0
    %1646 = vmatprep.subr.mxu0 0.0
    %1647 = vmatpush1.msra.mxu0 0.0
    %1648 = vmatprep.subr.mxu0 0.0
    %1649 = vmatpush1.msra.mxu0 0.0
    %1650 = vmatprep.subr.mxu0 0.0
    %1651 = vmatpush1.msra.mxu0 0.0
    %1652 = vmatprep.subr.mxu0 0.0
    %1653 = vmatpush1.msra.mxu0 0.0
    %1654 = vmatprep.subr.mxu0 0.0
    %1655 = vmatpush1.msra.mxu0 0.0
    %1656 = vmatprep.subr.mxu0 0.0
    %1657 = vmatpush1.msra.mxu0 0.0
    %1658 = vmatprep.subr.mxu0 0.0
    %1659 = vmatpush1.msra.mxu0 0.0
    %1660 = vmatprep.subr.mxu0 0.0
    %1661 = vmatpush1.msra.mxu0 0.0
    %1662 = vmatprep.subr.mxu0 0.0
    %1663 = vmatpush1.msra.mxu0 0.0
    %1664 = vmatprep.subr.mxu0 0.0
    %1665 = vmatpush1.msra.mxu0 0.0
    %1666 = vmatprep.subr.mxu0 0.0
    %1667 = vmatpush1.msra.mxu0 0.0
    %1668 = vmatprep.subr.mxu0 0.0
    %1669 = vmatpush1.msra.mxu0 0.0
    %1670 = vmatprep.subr.mxu0 0.0
    %1671 = vmatpush1.msra.mxu0 0.0
    %1672 = vmatprep.subr.mxu0 0.0
    %1673 = vmatpush1.msra.mxu0 0.0
    %1674 = vmatprep.subr.mxu0 0.0
    %1675 = vmatpush1.msra.mxu0 0.0
    %1676 = vmatprep.subr.mxu0 0.0
    %1677 = vmatpush1.msra.mxu0 0.0
    %1678 = vmatprep.subr.mxu0 0.0
    %1679 = vmatpush1.msra.mxu0 0.0
    %1680 = vmatprep.subr.mxu0 0.0
    %1681 = vmatpush1.msra.mxu0 0.0
    %1682 = vmatprep.subr.mxu0 0.0
    %1683 = vmatpush1.msra.mxu0 0.0
    %1684 = vmatprep.subr.mxu0 0.0
    %1685 = vmatpush1.msra.mxu0 0.0
    %1686 = vmatprep.mubr.f32.mxu0 0.0
    %1687 = vmatmul.mubr.f32.gmra.mrb[0].mxu0 %v1620
    %v1688 = vpop.f32.mrb[0].mxu0
    %v1689 = vadd.f32 0.0, %v1688
    %v1690 = vpop.f32.mrb[0].mxu0
    %1691 = vdwg.mxu0
    %v1693 = vrot.slane %v1689, 2
    %v1695 = vadd.f32 %v1294, %v1693
    %v1696 = vxor.u32 %v1695, 2147483648
    %v1697 = vmul.f32 %v1696, 1.442695
    %v1698 = vpow.pop %v1697
    %v1699 = vadd.f32 %v1698, 1.0
    %v1700 = vrcp.pop %v1699
    %v1701 = vmul.f32 1.0, %v1700
    %v1702 = vtanh.pop %v1695
    %v1704 = vrot.slane %v1609, 6
    %v1706 = vmul.f32 %v1701, %v1704
    %1708 = vrot.lane.b32.xlu0 %v1702, 32
    %v1709 = vpop.permute.xlu0 %1708
    %v1711 = vmul.f32 %v1701, %v1709
    %1713 = vrot.lane.b32.xlu0 %v1711, 32
    %v1714 = vpop.permute.xlu0 %1713
    %v1716 = vadd.f32 %v1706, %v1714
    %v1717 = vtanh.pop %v1716
    %1719 = vrot.lane.b32.xlu0 %v1717, 32
    %v1720 = vpop.permute.xlu0 %1719
    %v1722 = vmul.f32 %v1701, %v1720
    %v1724 = vrot.slane %v1722, 6
    %1725 = vrot.lane.b32.xlu0 %v1724, 64
    %v1726 = vpop.permute.xlu0 %1725
    %v1727 = vsel %vm594, %v1726, 0
    %1729 = vmatprep.subr.mxu0 0.0
    %1730 = vmatpush1.msra.mxu0 %v1302
    %1731 = vmatprep.subr.mxu0 0.0
    %1732 = vmatpush1.msra.mxu0 %v1303
    %1733 = vmatprep.subr.mxu0 0.0
    %1734 = vmatpush1.msra.mxu0 %v1304
    %1735 = vmatprep.subr.mxu0 0.0
    %1736 = vmatpush1.msra.mxu0 %v1305
    %1737 = vmatprep.subr.mxu0 0.0
    %1738 = vmatpush1.msra.mxu0 0.0
    %1739 = vmatprep.subr.mxu0 0.0
    %1740 = vmatpush1.msra.mxu0 0.0
    %1741 = vmatprep.subr.mxu0 0.0
    %1742 = vmatpush1.msra.mxu0 0.0
    %1743 = vmatprep.subr.mxu0 0.0
    %1744 = vmatpush1.msra.mxu0 0.0
    %1745 = vmatprep.subr.mxu0 0.0
    %1746 = vmatpush1.msra.mxu0 0.0
    %1747 = vmatprep.subr.mxu0 0.0
    %1748 = vmatpush1.msra.mxu0 0.0
    %1749 = vmatprep.subr.mxu0 0.0
    %1750 = vmatpush1.msra.mxu0 0.0
    %1751 = vmatprep.subr.mxu0 0.0
    %1752 = vmatpush1.msra.mxu0 0.0
    %1753 = vmatprep.subr.mxu0 0.0
    %1754 = vmatpush1.msra.mxu0 0.0
    %1755 = vmatprep.subr.mxu0 0.0
    %1756 = vmatpush1.msra.mxu0 0.0
    %1757 = vmatprep.subr.mxu0 0.0
    %1758 = vmatpush1.msra.mxu0 0.0
    %1759 = vmatprep.subr.mxu0 0.0
    %1760 = vmatpush1.msra.mxu0 0.0
    %1761 = vmatprep.subr.mxu0 0.0
    %1762 = vmatpush1.msra.mxu0 0.0
    %1763 = vmatprep.subr.mxu0 0.0
    %1764 = vmatpush1.msra.mxu0 0.0
    %1765 = vmatprep.subr.mxu0 0.0
    %1766 = vmatpush1.msra.mxu0 0.0
    %1767 = vmatprep.subr.mxu0 0.0
    %1768 = vmatpush1.msra.mxu0 0.0
    %1769 = vmatprep.subr.mxu0 0.0
    %1770 = vmatpush1.msra.mxu0 0.0
    %1771 = vmatprep.subr.mxu0 0.0
    %1772 = vmatpush1.msra.mxu0 0.0
    %1773 = vmatprep.subr.mxu0 0.0
    %1774 = vmatpush1.msra.mxu0 0.0
    %1775 = vmatprep.subr.mxu0 0.0
    %1776 = vmatpush1.msra.mxu0 0.0
    %1777 = vmatprep.subr.mxu0 0.0
    %1778 = vmatpush1.msra.mxu0 0.0
    %1779 = vmatprep.subr.mxu0 0.0
    %1780 = vmatpush1.msra.mxu0 0.0
    %1781 = vmatprep.subr.mxu0 0.0
    %1782 = vmatpush1.msra.mxu0 0.0
    %1783 = vmatprep.subr.mxu0 0.0
    %1784 = vmatpush1.msra.mxu0 0.0
    %1785 = vmatprep.subr.mxu0 0.0
    %1786 = vmatpush1.msra.mxu0 0.0
    %1787 = vmatprep.subr.mxu0 0.0
    %1788 = vmatpush1.msra.mxu0 0.0
    %1789 = vmatprep.subr.mxu0 0.0
    %1790 = vmatpush1.msra.mxu0 0.0
    %1791 = vmatprep.subr.mxu0 0.0
    %1792 = vmatpush1.msra.mxu0 0.0
    %1793 = vmatprep.mubr.f32.mxu0 0.0
    %1794 = vmatmul.mubr.f32.gmra.mrb[0].mxu0 %v1727
    %v1795 = vpop.f32.mrb[0].mxu0
    %v1796 = vadd.f32 0.0, %v1795
    %v1797 = vpop.f32.mrb[0].mxu0
    %1798 = vdwg.mxu0
    %v1799 = vadd.f32 %v1298, %v1796
    %v1800 = vxor.u32 %v1799, 2147483648
    %v1801 = vmul.f32 %v1800, 1.442695
    %v1802 = vpow.pop %v1801
    %v1803 = vadd.f32 %v1802, 1.0
    %v1804 = vrcp.pop %v1803
    %v1805 = vmul.f32 1.0, %v1804
    %v1806 = vtanh.pop %v1799
    %v1808 = vrot.slane %v1716, 6
    %v1810 = vmul.f32 %v1805, %v1808
    %1812 = vrot.lane.b32.xlu0 %v1806, 32
    %v1813 = vpop.permute.xlu0 %1812
    %v1815 = vmul.f32 %v1805, %v1813
    %1817 = vrot.lane.b32.xlu0 %v1815, 32
    %v1818 = vpop.permute.xlu0 %1817
    %v1820 = vadd.f32 %v1810, %v1818
    %v1821 = vtanh.pop %v1820
    %1823 = vrot.lane.b32.xlu0 %v1821, 32
    %v1824 = vpop.permute.xlu0 %1823
    %v1826 = vmul.f32 %v1805, %v1824
    %1828 = vrot.lane.b32.xlu0 %v1826, 64
    %v1829 = vpop.permute.xlu0 %1828
    %v1830 = vsel %vm594, %v1829, 0
    %1832 = vmatprep.subr.mxu0 0.0
    %1833 = vmatpush1.msra.mxu0 %v1302
    %1834 = vmatprep.subr.mxu0 0.0
    %1835 = vmatpush1.msra.mxu0 %v1303
    %1836 = vmatprep.subr.mxu0 0.0
    %1837 = vmatpush1.msra.mxu0 %v1304
    %1838 = vmatprep.subr.mxu0 0.0
    %1839 = vmatpush1.msra.mxu0 %v1305
    %1840 = vmatprep.subr.mxu0 0.0
    %1841 = vmatpush1.msra.mxu0 0.0
    %1842 = vmatprep.subr.mxu0 0.0
    %1843 = vmatpush1.msra.mxu0 0.0
    %1844 = vmatprep.subr.mxu0 0.0
    %1845 = vmatpush1.msra.mxu0 0.0
    %1846 = vmatprep.subr.mxu0 0.0
    %1847 = vmatpush1.msra.mxu0 0.0
    %1848 = vmatprep.subr.mxu0 0.0
    %1849 = vmatpush1.msra.mxu0 0.0
    %1850 = vmatprep.subr.mxu0 0.0
    %1851 = vmatpush1.msra.mxu0 0.0
    %1852 = vmatprep.subr.mxu0 0.0
    %1853 = vmatpush1.msra.mxu0 0.0
    %1854 = vmatprep.subr.mxu0 0.0
    %1855 = vmatpush1.msra.mxu0 0.0
    %1856 = vmatprep.subr.mxu0 0.0
    %1857 = vmatpush1.msra.mxu0 0.0
    %1858 = vmatprep.subr.mxu0 0.0
    %1859 = vmatpush1.msra.mxu0 0.0
    %1860 = vmatprep.subr.mxu0 0.0
    %1861 = vmatpush1.msra.mxu0 0.0
    %1862 = vmatprep.subr.mxu0 0.0
    %1863 = vmatpush1.msra.mxu0 0.0
    %1864 = vmatprep.subr.mxu0 0.0
    %1865 = vmatpush1.msra.mxu0 0.0
    %1866 = vmatprep.subr.mxu0 0.0
    %1867 = vmatpush1.msra.mxu0 0.0
    %1868 = vmatprep.subr.mxu0 0.0
    %1869 = vmatpush1.msra.mxu0 0.0
    %1870 = vmatprep.subr.mxu0 0.0
    %1871 = vmatpush1.msra.mxu0 0.0
    %1872 = vmatprep.subr.mxu0 0.0
    %1873 = vmatpush1.msra.mxu0 0.0
    %1874 = vmatprep.subr.mxu0 0.0
    %1875 = vmatpush1.msra.mxu0 0.0
    %1876 = vmatprep.subr.mxu0 0.0
    %1877 = vmatpush1.msra.mxu0 0.0
    %1878 = vmatprep.subr.mxu0 0.0
    %1879 = vmatpush1.msra.mxu0 0.0
    %1880 = vmatprep.subr.mxu0 0.0
    %1881 = vmatpush1.msra.mxu0 0.0
    %1882 = vmatprep.subr.mxu0 0.0
    %1883 = vmatpush1.msra.mxu0 0.0
    %1884 = vmatprep.subr.mxu0 0.0
    %1885 = vmatpush1.msra.mxu0 0.0
    %1886 = vmatprep.subr.mxu0 0.0
    %1887 = vmatpush1.msra.mxu0 0.0
    %1888 = vmatprep.subr.mxu0 0.0
    %1889 = vmatpush1.msra.mxu0 0.0
    %1890 = vmatprep.subr.mxu0 0.0
    %1891 = vmatpush1.msra.mxu0 0.0
    %1892 = vmatprep.subr.mxu0 0.0
    %1893 = vmatpush1.msra.mxu0 0.0
    %1894 = vmatprep.subr.mxu0 0.0
    %1895 = vmatpush1.msra.mxu0 0.0
    %1896 = vmatprep.mubr.f32.mxu0 0.0
    %1897 = vmatmul.mubr.f32.gmra.mrb[0].mxu0 %v1830
    %v1898 = vpop.f32.mrb[0].mxu0
    %v1899 = vadd.f32 0.0, %v1898
    %v1900 = vpop.f32.mrb[0].mxu0
    %1901 = vdwg.mxu0
    %v1903 = vrot.slane %v1899, 6
    %v1905 = vadd.f32 %v1301, %v1903
    %v1906 = vxor.u32 %v1905, 2147483648
    %v1907 = vmul.f32 %v1906, 1.442695
    %v1908 = vpow.pop %v1907
    %v1909 = vadd.f32 %v1908, 1.0
    %v1910 = vrcp.pop %v1909
    %v1911 = vmul.f32 1.0, %v1910
    %v1912 = vtanh.pop %v1905
    %v1914 = vrot.slane %v1820, 6
    %v1916 = vmul.f32 %v1911, %v1914
    %1918 = vrot.lane.b32.xlu0 %v1912, 32
    %v1919 = vpop.permute.xlu0 %1918
    %v1921 = vmul.f32 %v1911, %v1919
    %1923 = vrot.lane.b32.xlu0 %v1921, 32
    %v1924 = vpop.permute.xlu0 %1923
    %v1926 = vadd.f32 %v1916, %v1924
    %v1927 = vtanh.pop %v1926
    %1929 = vrot.lane.b32.xlu0 %v1927, 32
    %v1930 = vpop.permute.xlu0 %1929
    %v1932 = vmul.f32 %v1911, %v1930
    %v1934 = vrot.slane %v1932, 2
    %1935 = vrot.lane.b32.xlu0 %v1934, 64
    %v1936 = vpop.permute.xlu0 %1935
    %v1937 = vsel %vm594, %v1936, 0
    %1939 = vmatprep.subr.mxu0 0.0
    %1940 = vmatpush1.msra.mxu0 %v1302
    %1941 = vmatprep.subr.mxu0 0.0
    %1942 = vmatpush1.msra.mxu0 %v1303
    %1943 = vmatprep.subr.mxu0 0.0
    %1944 = vmatpush1.msra.mxu0 %v1304
    %1945 = vmatprep.subr.mxu0 0.0
    %1946 = vmatpush1.msra.mxu0 %v1305
    %1947 = vmatprep.subr.mxu0 0.0
    %1948 = vmatpush1.msra.mxu0 0.0
    %1949 = vmatprep.subr.mxu0 0.0
    %1950 = vmatpush1.msra.mxu0 0.0
    %1951 = vmatprep.subr.mxu0 0.0
    %1952 = vmatpush1.msra.mxu0 0.0
    %1953 = vmatprep.subr.mxu0 0.0
    %1954 = vmatpush1.msra.mxu0 0.0
    %1955 = vmatprep.subr.mxu0 0.0
    %1956 = vmatpush1.msra.mxu0 0.0
    %1957 = vmatprep.subr.mxu0 0.0
    %1958 = vmatpush1.msra.mxu0 0.0
    %1959 = vmatprep.subr.mxu0 0.0
    %1960 = vmatpush1.msra.mxu0 0.0
    %1961 = vmatprep.subr.mxu0 0.0
    %1962 = vmatpush1.msra.mxu0 0.0
    %1963 = vmatprep.subr.mxu0 0.0
    %1964 = vmatpush1.msra.mxu0 0.0
    %1965 = vmatprep.subr.mxu0 0.0
    %1966 = vmatpush1.msra.mxu0 0.0
    %1967 = vmatprep.subr.mxu0 0.0
    %1968 = vmatpush1.msra.mxu0 0.0
    %1969 = vmatprep.subr.mxu0 0.0
    %1970 = vmatpush1.msra.mxu0 0.0
    %1971 = vmatprep.subr.mxu0 0.0
    %1972 = vmatpush1.msra.mxu0 0.0
    %1973 = vmatprep.subr.mxu0 0.0
    %1974 = vmatpush1.msra.mxu0 0.0
    %1975 = vmatprep.subr.mxu0 0.0
    %1976 = vmatpush1.msra.mxu0 0.0
    %1977 = vmatprep.subr.mxu0 0.0
    %1978 = vmatpush1.msra.mxu0 0.0
    %1979 = vmatprep.subr.mxu0 0.0
    %1980 = vmatpush1.msra.mxu0 0.0
    %1981 = vmatprep.subr.mxu0 0.0
    %1982 = vmatpush1.msra.mxu0 0.0
    %1983 = vmatprep.subr.mxu0 0.0
    %1984 = vmatpush1.msra.mxu0 0.0
    %1985 = vmatprep.subr.mxu0 0.0
    %1986 = vmatpush1.msra.mxu0 0.0
    %1987 = vmatprep.subr.mxu0 0.0
    %1988 = vmatpush1.msra.mxu0 0.0
    %1989 = vmatprep.subr.mxu0 0.0
    %1990 = vmatpush1.msra.mxu0 0.0
    %1991 = vmatprep.subr.mxu0 0.0
    %1992 = vmatpush1.msra.mxu0 0.0
    %1993 = vmatprep.subr.mxu0 0.0
    %1994 = vmatpush1.msra.mxu0 0.0
    %1995 = vmatprep.subr.mxu0 0.0
    %1996 = vmatpush1.msra.mxu0 0.0
    %1997 = vmatprep.subr.mxu0 0.0
    %1998 = vmatpush1.msra.mxu0 0.0
    %1999 = vmatprep.subr.mxu0 0.0
    %2000 = vmatpush1.msra.mxu0 0.0
    %2001 = vmatprep.subr.mxu0 0.0
    %2002 = vmatpush1.msra.mxu0 0.0
    %2003 = vmatprep.mubr.f32.mxu0 0.0
    %2004 = vmatmul.mubr.f32.gmra.mrb[0].mxu0 %v1937
    %v2005 = vpop.f32.mrb[0].mxu0
    %v2006 = vadd.f32 0.0, %v2005
    %v2007 = vpop.f32.mrb[0].mxu0
    %2008 = vdwg.mxu0
    %v2010 = vrot.slane %v2006, 4
    %v2012 = vadd.f32 %v1298, %v2010
    %v2013 = vxor.u32 %v2012, 2147483648
    %v2014 = vmul.f32 %v2013, 1.442695
    %v2015 = vpow.pop %v2014
    %v2016 = vadd.f32 %v2015, 1.0
    %v2017 = vrcp.pop %v2016
    %v2018 = vmul.f32 1.0, %v2017
    %v2019 = vtanh.pop %v2012
    %v2021 = vrot.slane %v1926, 6
    %v2023 = vmul.f32 %v2018, %v2021
    %2025 = vrot.lane.b32.xlu0 %v2019, 32
    %v2026 = vpop.permute.xlu0 %2025
    %v2028 = vmul.f32 %v2018, %v2026
    %2030 = vrot.lane.b32.xlu0 %v2028, 32
    %v2031 = vpop.permute.xlu0 %2030
    %v2033 = vadd.f32 %v2023, %v2031
    %v2034 = vtanh.pop %v2033
    %2036 = vrot.lane.b32.xlu0 %v2034, 32
    %v2037 = vpop.permute.xlu0 %2036
    %v2039 = vmul.f32 %v2018, %v2037
    %v2041 = vrot.slane %v2039, 4
    %2042 = vrot.lane.b32.xlu0 %v2041, 64
    %v2043 = vpop.permute.xlu0 %2042
    %v2044 = vsel %vm594, %v2043, 0
    %2046 = vmatprep.subr.mxu0 0.0
    %2047 = vmatpush1.msra.mxu0 %v1302
    %2048 = vmatprep.subr.mxu0 0.0
    %2049 = vmatpush1.msra.mxu0 %v1303
    %2050 = vmatprep.subr.mxu0 0.0
    %2051 = vmatpush1.msra.mxu0 %v1304
    %2052 = vmatprep.subr.mxu0 0.0
    %2053 = vmatpush1.msra.mxu0 %v1305
    %2054 = vmatprep.subr.mxu0 0.0
    %2055 = vmatpush1.msra.mxu0 0.0
    %2056 = vmatprep.subr.mxu0 0.0
    %2057 = vmatpush1.msra.mxu0 0.0
    %2058 = vmatprep.subr.mxu0 0.0
    %2059 = vmatpush1.msra.mxu0 0.0
    %2060 = vmatprep.subr.mxu0 0.0
    %2061 = vmatpush1.msra.mxu0 0.0
    %2062 = vmatprep.subr.mxu0 0.0
    %2063 = vmatpush1.msra.mxu0 0.0
    %2064 = vmatprep.subr.mxu0 0.0
    %2065 = vmatpush1.msra.mxu0 0.0
    %2066 = vmatprep.subr.mxu0 0.0
    %2067 = vmatpush1.msra.mxu0 0.0
    %2068 = vmatprep.subr.mxu0 0.0
    %2069 = vmatpush1.msra.mxu0 0.0
    %2070 = vmatprep.subr.mxu0 0.0
    %2071 = vmatpush1.msra.mxu0 0.0
    %2072 = vmatprep.subr.mxu0 0.0
    %2073 = vmatpush1.msra.mxu0 0.0
    %2074 = vmatprep.subr.mxu0 0.0
    %2075 = vmatpush1.msra.mxu0 0.0
    %2076 = vmatprep.subr.mxu0 0.0
    %2077 = vmatpush1.msra.mxu0 0.0
    %2078 = vmatprep.subr.mxu0 0.0
    %2079 = vmatpush1.msra.mxu0 0.0
    %2080 = vmatprep.subr.mxu0 0.0
    %2081 = vmatpush1.msra.mxu0 0.0
    %2082 = vmatprep.subr.mxu0 0.0
    %2083 = vmatpush1.msra.mxu0 0.0
    %2084 = vmatprep.subr.mxu0 0.0
    %2085 = vmatpush1.msra.mxu0 0.0
    %2086 = vmatprep.subr.mxu0 0.0
    %2087 = vmatpush1.msra.mxu0 0.0
    %2088 = vmatprep.subr.mxu0 0.0
    %2089 = vmatpush1.msra.mxu0 0.0
    %2090 = vmatprep.subr.mxu0 0.0
    %2091 = vmatpush1.msra.mxu0 0.0
    %2092 = vmatprep.subr.mxu0 0.0
    %2093 = vmatpush1.msra.mxu0 0.0
    %2094 = vmatprep.subr.mxu0 0.0
    %2095 = vmatpush1.msra.mxu0 0.0
    %2096 = vmatprep.subr.mxu0 0.0
    %2097 = vmatpush1.msra.mxu0 0.0
    %2098 = vmatprep.subr.mxu0 0.0
    %2099 = vmatpush1.msra.mxu0 0.0
    %2100 = vmatprep.subr.mxu0 0.0
    %2101 = vmatpush1.msra.mxu0 0.0
    %2102 = vmatprep.subr.mxu0 0.0
    %2103 = vmatpush1.msra.mxu0 0.0
    %2104 = vmatprep.subr.mxu0 0.0
    %2105 = vmatpush1.msra.mxu0 0.0
    %2106 = vmatprep.subr.mxu0 0.0
    %2107 = vmatpush1.msra.mxu0 0.0
    %2108 = vmatprep.subr.mxu0 0.0
    %2109 = vmatpush1.msra.mxu0 0.0
    %2110 = vmatprep.mubr.f32.mxu0 0.0
    %2111 = vmatmul.mubr.f32.gmra.mrb[0].mxu0 %v2044
    %v2112 = vpop.f32.mrb[0].mxu0
    %v2113 = vadd.f32 0.0, %v2112
    %v2114 = vpop.f32.mrb[0].mxu0
    %2115 = vdwg.mxu0
    %v2117 = vrot.slane %v2113, 2
    %v2119 = vadd.f32 %v1301, %v2117
    %v2120 = vxor.u32 %v2119, 2147483648
    %v2121 = vmul.f32 %v2120, 1.442695
    %v2122 = vpow.pop %v2121
    %v2123 = vadd.f32 %v2122, 1.0
    %v2124 = vrcp.pop %v2123
    %v2125 = vmul.f32 1.0, %v2124
    %v2126 = vtanh.pop %v2119
    %v2128 = vrot.slane %v2033, 6
    %v2130 = vmul.f32 %v2125, %v2128
    %2132 = vrot.lane.b32.xlu0 %v2126, 32
    %v2133 = vpop.permute.xlu0 %2132
    %v2135 = vmul.f32 %v2125, %v2133
    %2137 = vrot.lane.b32.xlu0 %v2135, 32
    %v2138 = vpop.permute.xlu0 %2137
    %v2140 = vadd.f32 %v2130, %v2138
    %v2141 = vtanh.pop %v2140
    %2143 = vrot.lane.b32.xlu0 %v2141, 32
    %v2144 = vpop.permute.xlu0 %2143
    %v2146 = vmul.f32 %v2125, %v2144
    %vm2147 = vcmp.lt.s32.totalorder %v30, 16
    %v2148 = vsel %vm2147, 1, 0
    %vm2149 = vcmp.eq.s32.totalorder %v2148, 1
    %v2152 = vrot.slane %v2146, 6
    %2153 = vrot.lane.b32.xlu0 %v2152, 64
    %v2154 = vpop.permute.xlu0 %2153
    %v2156 = vsel %vm2149, %v1405, %v2154
    %v2159 = vsel %vm2149, %v1512, %v2043
    %v2162 = vsel %vm2149, %v1619, %v1936
    %v2165 = vsel %vm2149, %v1726, %v1829
    %v2166 = vsel %vm2149, %v1829, %v1726
    %v2167 = vsel %vm2149, %v1936, %v1619
    %v2168 = vsel %vm2149, %v2043, %v1512
    %v2169 = vsel %vm2149, %v2154, %v1405
    %v2172 = vunpack.c.l.s4 1966171168
    %v2173 = vunpack.c.0.s8 %v2172
    %v2174 = vlaneseq
    %v2175 = vshrl.u32 %v2174, 7
    %v2176 = vsub.s32 %v2173, %v2175
    %v2177 = vrot.slane %v2156, %v2176
    %v2178 = vcombine.high %v2177, %v2177
    %v2180 = vunpack.c.l.s4 1966171168
    %v2181 = vunpack.c.0.s8 %v2180
    %v2182 = vlaneseq
    %v2183 = vshrl.u32 %v2182, 7
    %v2184 = vsub.s32 %v2181, %v2183
    %v2185 = vrot.slane %v2177, %v2184
    %v2187 = vunpack.c.l.s4 1966171168
    %v2188 = vunpack.c.0.s8 %v2187
    %v2189 = vlaneseq
    %v2190 = vshrl.u32 %v2189, 7
    %v2191 = vsub.s32 %v2188, %v2190
    %v2192 = vrot.slane %v2178, %v2191
    %v2197 = vunpack.c.l.s4 1966171168
    %v2198 = vunpack.c.0.s8 %v2197
    %v2199 = vlaneseq
    %v2200 = vshrl.u32 %v2199, 7
    %v2201 = vsub.s32 %v2198, %v2200
    %v2202 = vrot.slane %v2159, %v2201
    %v2203 = vcombine.high %v2202, %v2202
    %v2205 = vunpack.c.l.s4 1966171168
    %v2206 = vunpack.c.0.s8 %v2205
    %v2207 = vlaneseq
    %v2208 = vshrl.u32 %v2207, 7
    %v2209 = vsub.s32 %v2206, %v2208
    %v2210 = vrot.slane %v2202, %v2209
    %v2212 = vunpack.c.l.s4 1966171168
    %v2213 = vunpack.c.0.s8 %v2212
    %v2214 = vlaneseq
    %v2215 = vshrl.u32 %v2214, 7
    %v2216 = vsub.s32 %v2213, %v2215
    %v2217 = vrot.slane %v2203, %v2216
    %v2220 = vunpack.c.l.s4 1966171168
    %v2221 = vunpack.c.0.s8 %v2220
    %v2222 = vlaneseq
    %v2223 = vshrl.u32 %v2222, 7
    %v2224 = vsub.s32 %v2221, %v2223
    %v2225 = vrot.slane %v2162, %v2224
    %v2226 = vcombine.high %v2225, %v2225
    %v2228 = vunpack.c.l.s4 1966171168
    %v2229 = vunpack.c.0.s8 %v2228
    %v2230 = vlaneseq
    %v2231 = vshrl.u32 %v2230, 7
    %v2232 = vsub.s32 %v2229, %v2231
    %v2233 = vrot.slane %v2225, %v2232
    %v2235 = vunpack.c.l.s4 1966171168
    %v2236 = vunpack.c.0.s8 %v2235
    %v2237 = vlaneseq
    %v2238 = vshrl.u32 %v2237, 7
    %v2239 = vsub.s32 %v2236, %v2238
    %v2240 = vrot.slane %v2226, %v2239
    %v2243 = vunpack.c.l.s4 1966171168
    %v2244 = vunpack.c.0.s8 %v2243
    %v2245 = vlaneseq
    %v2246 = vshrl.u32 %v2245, 7
    %v2247 = vsub.s32 %v2244, %v2246
    %v2248 = vrot.slane %v2165, %v2247
    %v2249 = vcombine.high %v2248, %v2248
    %v2251 = vunpack.c.l.s4 1966171168
    %v2252 = vunpack.c.0.s8 %v2251
    %v2253 = vlaneseq
    %v2254 = vshrl.u32 %v2253, 7
    %v2255 = vsub.s32 %v2252, %v2254
    %v2256 = vrot.slane %v2248, %v2255
    %v2258 = vunpack.c.l.s4 1966171168
    %v2259 = vunpack.c.0.s8 %v2258
    %v2260 = vlaneseq
    %v2261 = vshrl.u32 %v2260, 7
    %v2262 = vsub.s32 %v2259, %v2261
    %v2263 = vrot.slane %v2249, %v2262
    %v2266 = vunpack.c.l.s4 1966171168
    %v2267 = vunpack.c.0.s8 %v2266
    %v2268 = vlaneseq
    %v2269 = vshrl.u32 %v2268, 7
    %v2270 = vsub.s32 %v2267, %v2269
    %v2271 = vrot.slane %v2166, %v2270
    %v2272 = vcombine.high %v2271, %v2271
    %v2274 = vunpack.c.l.s4 1966171168
    %v2275 = vunpack.c.0.s8 %v2274
    %v2276 = vlaneseq
    %v2277 = vshrl.u32 %v2276, 7
    %v2278 = vsub.s32 %v2275, %v2277
    %v2279 = vrot.slane %v2271, %v2278
    %v2281 = vunpack.c.l.s4 1966171168
    %v2282 = vunpack.c.0.s8 %v2281
    %v2283 = vlaneseq
    %v2284 = vshrl.u32 %v2283, 7
    %v2285 = vsub.s32 %v2282, %v2284
    %v2286 = vrot.slane %v2272, %v2285
    %v2289 = vunpack.c.l.s4 1966171168
    %v2290 = vunpack.c.0.s8 %v2289
    %v2291 = vlaneseq
    %v2292 = vshrl.u32 %v2291, 7
    %v2293 = vsub.s32 %v2290, %v2292
    %v2294 = vrot.slane %v2167, %v2293
    %v2295 = vcombine.high %v2294, %v2294
    %v2297 = vunpack.c.l.s4 1966171168
    %v2298 = vunpack.c.0.s8 %v2297
    %v2299 = vlaneseq
    %v2300 = vshrl.u32 %v2299, 7
    %v2301 = vsub.s32 %v2298, %v2300
    %v2302 = vrot.slane %v2294, %v2301
    %v2304 = vunpack.c.l.s4 1966171168
    %v2305 = vunpack.c.0.s8 %v2304
    %v2306 = vlaneseq
    %v2307 = vshrl.u32 %v2306, 7
    %v2308 = vsub.s32 %v2305, %v2307
    %v2309 = vrot.slane %v2295, %v2308
    %v2312 = vunpack.c.l.s4 1966171168
    %v2313 = vunpack.c.0.s8 %v2312
    %v2314 = vlaneseq
    %v2315 = vshrl.u32 %v2314, 7
    %v2316 = vsub.s32 %v2313, %v2315
    %v2317 = vrot.slane %v2168, %v2316
    %v2318 = vcombine.high %v2317, %v2317
    %v2320 = vunpack.c.l.s4 1966171168
    %v2321 = vunpack.c.0.s8 %v2320
    %v2322 = vlaneseq
    %v2323 = vshrl.u32 %v2322, 7
    %v2324 = vsub.s32 %v2321, %v2323
    %v2325 = vrot.slane %v2317, %v2324
    %v2327 = vunpack.c.l.s4 1966171168
    %v2328 = vunpack.c.0.s8 %v2327
    %v2329 = vlaneseq
    %v2330 = vshrl.u32 %v2329, 7
    %v2331 = vsub.s32 %v2328, %v2330
    %v2332 = vrot.slane %v2318, %v2331
    %v2335 = vunpack.c.l.s4 1966171168
    %v2336 = vunpack.c.0.s8 %v2335
    %v2337 = vlaneseq
    %v2338 = vshrl.u32 %v2337, 7
    %v2339 = vsub.s32 %v2336, %v2338
    %v2340 = vrot.slane %v2169, %v2339
    %v2341 = vcombine.high %v2340, %v2340
    %v2343 = vunpack.c.l.s4 1966171168
    %v2344 = vunpack.c.0.s8 %v2343
    %v2345 = vlaneseq
    %v2346 = vshrl.u32 %v2345, 7
    %v2347 = vsub.s32 %v2344, %v2346
    %v2348 = vrot.slane %v2340, %v2347
    %v2350 = vunpack.c.l.s4 1966171168
    %v2351 = vunpack.c.0.s8 %v2350
    %v2352 = vlaneseq
    %v2353 = vshrl.u32 %v2352, 7
    %v2354 = vsub.s32 %v2351, %v2353
    %v2355 = vrot.slane %v2341, %v2354
    %v2356 = vlaneseq
    %v2357 = vshrl.u32 %v2356, 7
    %v2358 = vsub.s32 0, %v2357
    %v2359 = vrot.slane %v2210, %v2358
    %v2360 = vlaneseq
    %v2361 = vshrl.u32 %v2360, 7
    %v2362 = vsub.s32 0, %v2361
    %v2363 = vrot.slane %v2217, %v2362
    %v2366 = vlaneseq
    %v2367 = vshrl.u32 %v2366, 7
    %v2368 = vsub.s32 0, %v2367
    %v2369 = vrot.slane %v2233, %v2368
    %v2370 = vlaneseq
    %v2371 = vshrl.u32 %v2370, 7
    %v2372 = vsub.s32 0, %v2371
    %v2373 = vrot.slane %v2240, %v2372
    %v2376 = vlaneseq
    %v2377 = vshrl.u32 %v2376, 7
    %v2378 = vsub.s32 0, %v2377
    %v2379 = vrot.slane %v2256, %v2378
    %v2380 = vlaneseq
    %v2381 = vshrl.u32 %v2380, 7
    %v2382 = vsub.s32 0, %v2381
    %v2383 = vrot.slane %v2263, %v2382
    %v2386 = vlaneseq
    %v2387 = vshrl.u32 %v2386, 7
    %v2388 = vsub.s32 0, %v2387
    %v2389 = vrot.slane %v2279, %v2388
    %v2390 = vlaneseq
    %v2391 = vshrl.u32 %v2390, 7
    %v2392 = vsub.s32 0, %v2391
    %v2393 = vrot.slane %v2286, %v2392
    %v2396 = vlaneseq
    %v2397 = vshrl.u32 %v2396, 7
    %v2398 = vsub.s32 0, %v2397
    %v2399 = vrot.slane %v2302, %v2398
    %v2400 = vlaneseq
    %v2401 = vshrl.u32 %v2400, 7
    %v2402 = vsub.s32 0, %v2401
    %v2403 = vrot.slane %v2309, %v2402
    %v2406 = vlaneseq
    %v2407 = vshrl.u32 %v2406, 7
    %v2408 = vsub.s32 0, %v2407
    %v2409 = vrot.slane %v2325, %v2408
    %v2410 = vlaneseq
    %v2411 = vshrl.u32 %v2410, 7
    %v2412 = vsub.s32 0, %v2411
    %v2413 = vrot.slane %v2332, %v2412
    %v2416 = vlaneseq
    %v2417 = vshrl.u32 %v2416, 7
    %v2418 = vsub.s32 0, %v2417
    %v2419 = vrot.slane %v2348, %v2418
    %v2420 = vlaneseq
    %v2421 = vshrl.u32 %v2420, 7
    %v2422 = vsub.s32 0, %v2421
    %v2423 = vrot.slane %v2355, %v2422
    %vm2426 = vcmask 1040384
    %v2427 = vsel %vm2426, %v2185, %v2359
    %v2428 = vsel %vm2426, %v2192, %v2363
    %v2429 = vsel %vm1187, %v2427, %v2369
    %v2430 = vsel %vm1187, %v2428, %v2373
    %vm2431 = vcmask 1042432
    %v2432 = vsel %vm2431, %v2429, %v2379
    %v2433 = vsel %vm2431, %v2430, %v2383
    %vm2434 = vcmask 1043456
    %v2435 = vsel %vm2434, %v2432, %v2389
    %v2436 = vsel %vm2434, %v2433, %v2393
    %vm2437 = vcmask 1044480
    %v2438 = vsel %vm2437, %v2435, %v2399
    %v2439 = vsel %vm2437, %v2436, %v2403
    %v2440 = vsel %vm182, %v2438, %v2409
    %v2441 = vsel %vm182, %v2439, %v2413
    %vm2442 = vcmask 1046528
    %v2443 = vsel %vm2442, %v2440, %v2419
    %v2444 = vsel %vm2442, %v2441, %v2423
    %v2445 = vld [vmem:[#allocation2 + $0xb8] sm:$0xff]
    %v2446 = vld [vmem:[#allocation2 + $0xc0] sm:$0xff]
    %v2447 = vld [vmem:[#allocation2 + $0xc8] sm:$0xff]
    %v2448 = vld [vmem:[#allocation2 + $0xd0] sm:$0xff]
    %v2449 = vld [vmem:[#allocation2 + $0xd8] sm:$0x1]
    %v2450 = vlaneseq
    %v2451 = vshrl.u32 %v2450, 7
    %v2452 = vsub.s32 0, %v2451
    %v2453 = vrot.slane %v2449, %v2452
    %v2455 = vsel %vm594, %v2443, 0
    %v2458 = vsel %vm594, %v2444, 0
    %2460 = vmatprep.subr.mxu0 0.0
    %2461 = vmatpush1.msra.mxu0 %v2445
    %2462 = vmatprep.subr.mxu0 0.0
    %2463 = vmatpush1.msra.mxu0 %v2446
    %2464 = vmatprep.subr.mxu0 0.0
    %2465 = vmatpush1.msra.mxu0 %v2447
    %2466 = vmatprep.subr.mxu0 0.0
    %2467 = vmatpush1.msra.mxu0 %v2448
    %2468 = vmatprep.subr.mxu0 0.0
    %2469 = vmatpush1.msra.mxu0 0.0
    %2470 = vmatprep.subr.mxu0 0.0
    %2471 = vmatpush1.msra.mxu0 0.0
    %2472 = vmatprep.subr.mxu0 0.0
    %2473 = vmatpush1.msra.mxu0 0.0
    %2474 = vmatprep.subr.mxu0 0.0
    %2475 = vmatpush1.msra.mxu0 0.0
    %2476 = vmatprep.subr.mxu0 0.0
    %2477 = vmatpush1.msra.mxu0 0.0
    %2478 = vmatprep.subr.mxu0 0.0
    %2479 = vmatpush1.msra.mxu0 0.0
    %2480 = vmatprep.subr.mxu0 0.0
    %2481 = vmatpush1.msra.mxu0 0.0
    %2482 = vmatprep.subr.mxu0 0.0
    %2483 = vmatpush1.msra.mxu0 0.0
    %2484 = vmatprep.subr.mxu0 0.0
    %2485 = vmatpush1.msra.mxu0 0.0
    %2486 = vmatprep.subr.mxu0 0.0
    %2487 = vmatpush1.msra.mxu0 0.0
    %2488 = vmatprep.subr.mxu0 0.0
    %2489 = vmatpush1.msra.mxu0 0.0
    %2490 = vmatprep.subr.mxu0 0.0
    %2491 = vmatpush1.msra.mxu0 0.0
    %2492 = vmatprep.subr.mxu0 0.0
    %2493 = vmatpush1.msra.mxu0 0.0
    %2494 = vmatprep.subr.mxu0 0.0
    %2495 = vmatpush1.msra.mxu0 0.0
    %2496 = vmatprep.subr.mxu0 0.0
    %2497 = vmatpush1.msra.mxu0 0.0
    %2498 = vmatprep.subr.mxu0 0.0
    %2499 = vmatpush1.msra.mxu0 0.0
    %2500 = vmatprep.subr.mxu0 0.0
    %2501 = vmatpush1.msra.mxu0 0.0
    %2502 = vmatprep.subr.mxu0 0.0
    %2503 = vmatpush1.msra.mxu0 0.0
    %2504 = vmatprep.subr.mxu0 0.0
    %2505 = vmatpush1.msra.mxu0 0.0
    %2506 = vmatprep.subr.mxu0 0.0
    %2507 = vmatpush1.msra.mxu0 0.0
    %2508 = vmatprep.subr.mxu0 0.0
    %2509 = vmatpush1.msra.mxu0 0.0
    %2510 = vmatprep.subr.mxu0 0.0
    %2511 = vmatpush1.msra.mxu0 0.0
    %2512 = vmatprep.subr.mxu0 0.0
    %2513 = vmatpush1.msra.mxu0 0.0
    %2514 = vmatprep.subr.mxu0 0.0
    %2515 = vmatpush1.msra.mxu0 0.0
    %2516 = vmatprep.subr.mxu0 0.0
    %2517 = vmatpush1.msra.mxu0 0.0
    %2518 = vmatprep.subr.mxu0 0.0
    %2519 = vmatpush1.msra.mxu0 0.0
    %2520 = vmatprep.subr.mxu0 0.0
    %2521 = vmatpush1.msra.mxu0 0.0
    %2522 = vmatprep.subr.mxu0 0.0
    %2523 = vmatpush1.msra.mxu0 0.0
    %2524 = vmatprep.mubr.f32.mxu0 0.0
    %2525 = vmatmul.mubr.f32.gmra.mrb[0].mxu0 %v2455
    %v2526 = vpop.f32.mrb[0].mxu0
    %v2527 = vadd.f32 %v2453, %v2526
    %v2528 = vpop.f32.mrb[0].mxu0
    %2529 = vmatprep.mubr.f32.mxu0 0.0
    %2530 = vmatmul.mubr.f32.gmra.mrb[0].mxu0 %v2458
    %v2531 = vpop.f32.mrb[0].mxu0
    %v2532 = vadd.f32 %v2453, %v2531
    %v2533 = vpop.f32.mrb[0].mxu0
    %2534 = vdwg.mxu0
    %vm2535 = vcmp.gt.f32.partialorder %v2527, 0.0
    %vm2536 = vcmp.gt.f32.partialorder %v2532, 0.0
    %v2537 = vmin.f32 %v2527, 0.0
    %v2538 = vmin.f32 %v2532, 0.0
    %v2539 = vmul.f32 %v2537, 1.442695
    %v2540 = vpow.pop %v2539
    %v2541 = vmul.f32 %v2538, 1.442695
    %v2542 = vpow.pop %v2541
    %v2543 = vsub.f32 %v2540, 1.0
    %v2544 = vsub.f32 %v2542, 1.0
    %v2545 = vsel %vm2535, %v2527, %v2543
    %v2546 = vsel %vm2536, %v2532, %v2544
    %v2547 = vld [vmem:[#allocation2 + $0xe0] sm:$0xff]
    %v2548 = vld [vmem:[#allocation2 + $0xe8] sm:$0xff]
    %v2549 = vld [vmem:[#allocation2 + $0xf0] sm:$0xff]
    %v2550 = vld [vmem:[#allocation2 + $0xf8] sm:$0xff]
    %v2551 = vld [vmem:[#allocation2 + $0x100] sm:$0x1]
    %v2552 = vlaneseq
    %v2553 = vshrl.u32 %v2552, 7
    %v2554 = vsub.s32 0, %v2553
    %v2555 = vrot.slane %v2551, %v2554
    %v2557 = vsel %vm594, %v2545, 0
    %v2560 = vsel %vm594, %v2546, 0
    %2562 = vmatprep.subr.mxu0 0.0
    %2563 = vmatpush1.msra.mxu0 %v2547
    %2564 = vmatprep.subr.mxu0 0.0
    %2565 = vmatpush1.msra.mxu0 %v2548
    %2566 = vmatprep.subr.mxu0 0.0
    %2567 = vmatpush1.msra.mxu0 %v2549
    %2568 = vmatprep.subr.mxu0 0.0
    %2569 = vmatpush1.msra.mxu0 %v2550
    %2570 = vmatprep.subr.mxu0 0.0
    %2571 = vmatpush1.msra.mxu0 0.0
    %2572 = vmatprep.subr.mxu0 0.0
    %2573 = vmatpush1.msra.mxu0 0.0
    %2574 = vmatprep.subr.mxu0 0.0
    %2575 = vmatpush1.msra.mxu0 0.0
    %2576 = vmatprep.subr.mxu0 0.0
    %2577 = vmatpush1.msra.mxu0 0.0
    %2578 = vmatprep.subr.mxu0 0.0
    %2579 = vmatpush1.msra.mxu0 0.0
    %2580 = vmatprep.subr.mxu0 0.0
    %2581 = vmatpush1.msra.mxu0 0.0
    %2582 = vmatprep.subr.mxu0 0.0
    %2583 = vmatpush1.msra.mxu0 0.0
    %2584 = vmatprep.subr.mxu0 0.0
    %2585 = vmatpush1.msra.mxu0 0.0
    %2586 = vmatprep.subr.mxu0 0.0
    %2587 = vmatpush1.msra.mxu0 0.0
    %2588 = vmatprep.subr.mxu0 0.0
    %2589 = vmatpush1.msra.mxu0 0.0
    %2590 = vmatprep.subr.mxu0 0.0
    %2591 = vmatpush1.msra.mxu0 0.0
    %2592 = vmatprep.subr.mxu0 0.0
    %2593 = vmatpush1.msra.mxu0 0.0
    %2594 = vmatprep.subr.mxu0 0.0
    %2595 = vmatpush1.msra.mxu0 0.0
    %2596 = vmatprep.subr.mxu0 0.0
    %2597 = vmatpush1.msra.mxu0 0.0
    %2598 = vmatprep.subr.mxu0 0.0
    %2599 = vmatpush1.msra.mxu0 0.0
    %2600 = vmatprep.subr.mxu0 0.0
    %2601 = vmatpush1.msra.mxu0 0.0
    %2602 = vmatprep.subr.mxu0 0.0
    %2603 = vmatpush1.msra.mxu0 0.0
    %2604 = vmatprep.subr.mxu0 0.0
    %2605 = vmatpush1.msra.mxu0 0.0
    %2606 = vmatprep.subr.mxu0 0.0
    %2607 = vmatpush1.msra.mxu0 0.0
    %2608 = vmatprep.subr.mxu0 0.0
    %2609 = vmatpush1.msra.mxu0 0.0
    %2610 = vmatprep.subr.mxu0 0.0
    %2611 = vmatpush1.msra.mxu0 0.0
    %2612 = vmatprep.subr.mxu0 0.0
    %2613 = vmatpush1.msra.mxu0 0.0
    %2614 = vmatprep.subr.mxu0 0.0
    %2615 = vmatpush1.msra.mxu0 0.0
    %2616 = vmatprep.subr.mxu0 0.0
    %2617 = vmatpush1.msra.mxu0 0.0
    %2618 = vmatprep.subr.mxu0 0.0
    %2619 = vmatpush1.msra.mxu0 0.0
    %2620 = vmatprep.subr.mxu0 0.0
    %2621 = vmatpush1.msra.mxu0 0.0
    %2622 = vmatprep.subr.mxu0 0.0
    %2623 = vmatpush1.msra.mxu0 0.0
    %2624 = vmatprep.subr.mxu0 0.0
    %2625 = vmatpush1.msra.mxu0 0.0
    %2626 = vmatprep.mubr.f32.mxu0 0.0
    %2627 = vmatmul.mubr.f32.gmra.mrb[0].mxu0 %v2557
    %v2628 = vpop.f32.mrb[0].mxu0
    %v2629 = vadd.f32 %v2555, %v2628
    %v2630 = vpop.f32.mrb[0].mxu0
    %2631 = vmatprep.mubr.f32.mxu0 0.0
    %2632 = vmatmul.mubr.f32.gmra.mrb[0].mxu0 %v2560
    %v2633 = vpop.f32.mrb[0].mxu0
    %v2634 = vadd.f32 %v2555, %v2633
    %v2635 = vpop.f32.mrb[0].mxu0
    %2636 = vdwg.mxu0
    %vm2637 = vcmask 293888
    %2638 = vst.msk [vmem:[#allocation5] sm:$0xff] %vm2637, %v2629
    %2639 = vst.msk [vmem:[#allocation5 + $0x8] sm:$0xff] %vm2637, %v2634
    // Predicated region
    $region18: #{tpu_custom_call.1} parent=1 // pred_check
      _
    $region19: #{tpu_custom_call.1} parent=1 // pred_check_branch
      %2641 = sbr.rel (0) target = $region21
    $region20: #{tpu_custom_call.1} parent=1 // pred_region
      %s2643 = ssub.s32 256, 256
      %2644 = vsyncadd [#allocation4], %s2643
      %s2645 = sshll.u32 [#allocation5], 4
      %s2646 = int_to_ptr.vmem [resolvable:$true] %s2645
      %2651 = dma.vmem_to_hbm [thread:$0]  %s2646, 256, %s3, [#allocation4], 128, 128, 8
    $region21: #{tpu_custom_call.1} parent=1 // pred_fallthru
      _
    // Predicated region
    $region22: #{tpu_custom_call.1} parent=1 // pred_check
      _
    $region23: #{tpu_custom_call.1} parent=1 // pred_check_branch
      %2653 = sbr.rel (0) target = $region25
    $region24: #{tpu_custom_call.1} parent=1 // pred_region
      %2654 = dma.done [#allocation4], 256
    $region25: #{tpu_custom_call.1} parent=1 // pred_fallthru
      _
    %2655 = vsyncpa [#allocation3], 1
    %2656 = vsyncpa [#allocation4], 1

</llo_original>
